<compile_context>
chip_gen: v5e
topology: v5e:2x2
jax: 0.10.0
libtpu: 0.0.40
codegen_flags: <defaults>
</compile_context>

<pallas_src>
import functools

import jax
import jax.numpy as jnp
import numpy as np
from jax.experimental import pallas as pl
from jax.experimental.pallas import tpu as pltpu

TWOPI = 2.0 * np.pi

# ---- static Squasher configuration (baked into the kernel) ----------------
Y_MEAN, Y_SD = 0.0, 1.0
LOW_RAW, HIGH_RAW = -1.0, 1.0
SQUASH_L = (LOW_RAW - Y_MEAN) / Y_SD
SQUASH_H = (HIGH_RAW - Y_MEAN) / Y_SD
SQUASH_ALPHA = 0.01

F_TOTAL = 12          # 7 yearly + 5 monthly angular frequencies
TILE_N = 512          # lane tile: fits easily in scoped VMEM on v5e/v6e/v7x


def _softplus(x):
    # matches torch.nn.functional.softplus (beta=1, threshold=20)
    return jnp.where(x > 20.0, x, jnp.log1p(jnp.exp(jnp.minimum(x, 20.0))))


def qmodel_kernel(t_ref, x_ref, p_ref, out_ref, *, dims):
    t = t_ref[...]                        # [1, TN]   time values along lanes
    x = x_ref[...]                        # [D, TN]   features, D on sublanes
    pp = p_ref[...]                       # [F, 6+D]  packed parameters

    freqs = pp[:, 0:1]                    # [F, 1] angular frequencies
    amp = pp[:, 1:2]                      # [F, 1] amplitudes  (median model)
    phi = pp[:, 2:3]                      # [F, 1] phases
    wt = pp[0:3, 3:4]                     # [3, 1] Trend weights (3 models)
    bt = pp[0:3, 4:5]                     # [3, 1] Trend biases
    signs = pp[0:3, 5:6]                  # [3, 1] quantile signs (-1, 0, +1)

    # Fourier seasonality for the median model only (amplitude/phase form):
    #   sum_k a_k * cos(w_k * t + phi_k)  == sum_k wc_k*cos + ws_k*sin
    phase = freqs * t + phi                                    # [F, TN]
    seasonal = jnp.sum(amp * jnp.cos(phase), axis=0,
                       keepdims=True)                          # [1, TN]

    # Trend (Linear(1,1)) + LinearX (Linear(D,1), no bias) for all 3 models.
    # Pure VPU broadcast FMAs: only 3 output rows, so the MXU would be wasted.
    base = wt * t + bt                                         # [3, TN]
    for d in range(dims):                 # static unroll, D is small
        base = base + pp[0:3, 6 + d:7 + d] * x[d:d + 1, :]     # [3, TN]

    median = base[1:2, :] + seasonal                           # [1, TN]
    # col0 = median - softplus(base0); col1 = median; col2 = median + softplus(base2)
    pred = median + signs * _softplus(base)                    # [3, TN]

    # outer Squasher (soft clip)
    pred = jnp.where(pred < SQUASH_L,
                     SQUASH_ALPHA * (pred - SQUASH_L) + SQUASH_L, pred)
    pred = jnp.where(pred > SQUASH_H,
                     SQUASH_ALPHA * (pred - SQUASH_H) + SQUASH_H, pred)
    out_ref[...] = pred


def default_qmodel_forward(t, x, params, *, tile_n=TILE_N):
    """t: [N,1] f32, x: [N,D] f32 -> [N,3] f32 quantile predictions."""
    N, D = x.shape
    packed = params["packed"]                       # [F_TOTAL, 6+D]

    n_blocks = pl.cdiv(N, tile_n)
    n_pad = n_blocks * tile_n

    # Lane-dense (transposed) inputs, zero-padded to a multiple of tile_n.
    tT = jnp.zeros((1, n_pad), jnp.float32).at[:, :N].set(t.reshape(1, N))
    xT = jnp.zeros((D, n_pad), jnp.float32).at[:, :N].set(x.T)

    cost = pl.CostEstimate(
        flops=int(n_pad) * (4 * F_TOTAL + 6 * (D + 4)),
        transcendentals=int(n_pad) * (F_TOTAL + 6),     # 12 cos + 3 exp + 3 log1p
        bytes_accessed=int((n_pad * (1 + D + 3) + packed.size) * 4),
    )

    out_t = pl.pallas_call(
        functools.partial(qmodel_kernel, dims=D),
        out_shape=jax.ShapeDtypeStruct((3, n_pad), jnp.float32),
        grid=(n_blocks,),
        in_specs=[
            pl.BlockSpec((1, tile_n), lambda i: (0, i)),          # t
            pl.BlockSpec((D, tile_n), lambda i: (0, i)),          # x
            pl.BlockSpec(packed.shape, lambda i: (0, 0)),         # params (resident)
        ],
        out_specs=pl.BlockSpec((3, tile_n), lambda i: (0, i)),
        compiler_params=pltpu.CompilerParams(
            dimension_semantics=("parallel",),
            vmem_limit_bytes=32 * 1024 * 1024),
        cost_estimate=cost,
    )(tT, xT, packed)

    return out_t[:, :N].T                            # back to [N, 3]


def reference_forward(t, x, params):
    """Pure-JAX reference mirroring the PyTorch forward exactly (cos+sin form)."""
    phase = t * params["freqs"]
    seasonal = jnp.sum(jnp.cos(phase) * params["wc"] +
                       jnp.sin(phase) * params["ws"], axis=-1, keepdims=True)
    base = t * params["wt"] + params["bt"] + x @ params["wxT"]
    median = base[:, 1:2] + seasonal
    sp = jnp.where(base > 20.0, base, jnp.log1p(jnp.exp(jnp.minimum(base, 20.0))))
    pred = median + params["signs"] * sp
    pred = jnp.where(pred < SQUASH_L, SQUASH_ALPHA * (pred - SQUASH_L) + SQUASH_L, pred)
    pred = jnp.where(pred > SQUASH_H, SQUASH_ALPHA * (pred - SQUASH_H) + SQUASH_H, pred)
    return pred


def make_params(key, dims):
    """Deterministic synthetic parameters (shapes implied by the module)."""
    scale = 1.0                        # moments['t'][1]
    y_n, y_p = 7, 365.25
    m_n, m_p = 5, 30.5
    # angular frequencies 2*pi*k/p, yearly then monthly (matches cat(cos..)+cat(sin..))
    fy = TWOPI * np.arange(1, y_n + 1) / (y_p / scale)
    fm = TWOPI * np.arange(1, m_n + 1) / (m_p / scale)
    freqs = np.concatenate([fy, fm]).astype(np.float32)            # [12]

    k = jax.random.split(key, 5)
    wc = 0.1 * jax.random.normal(k[0], (F_TOTAL,), jnp.float32)    # cos weights (median)
    ws = 0.1 * jax.random.normal(k[1], (F_TOTAL,), jnp.float32)    # sin weights
    wt = 0.05 * jax.random.normal(k[2], (3,), jnp.float32)         # Trend weights, 3 models
    bt = 0.1 * jax.random.normal(k[3], (3,), jnp.float32)          # Trend biases
    wx = 0.1 * jax.random.normal(k[4], (3, dims), jnp.float32)     # LinearX weights
    signs = np.asarray([-1.0, 0.0, 1.0], np.float32)               # quantile signs

    # amplitude/phase reparameterization (host side):
    #   wc*cos(th) + ws*sin(th) == a*cos(th + phi),  a = |(wc,ws)|, phi = -atan2(ws, wc)
    wc_np, ws_np = np.asarray(wc), np.asarray(ws)
    amp = np.sqrt(wc_np ** 2 + ws_np ** 2).astype(np.float32)
    phi = (-np.arctan2(ws_np, wc_np)).astype(np.float32)

    packed = np.zeros((F_TOTAL, 6 + dims), np.float32)
    packed[:, 0] = freqs
    packed[:, 1] = amp
    packed[:, 2] = phi
    packed[:3, 3] = np.asarray(wt)
    packed[:3, 4] = np.asarray(bt)
    packed[:3, 5] = signs
    packed[:3, 6:] = np.asarray(wx)

    return dict(
        packed=jnp.asarray(packed),
        # raw (PyTorch-layout) parameters for the pure-JAX reference
        freqs=jnp.asarray(freqs)[None, :], wc=wc[None, :], ws=ws[None, :],
        wt=wt[None, :], bt=bt[None, :], wxT=jnp.asarray(wx).T,
        signs=jnp.asarray(signs)[None, :],
    )


if __name__ == "__main__":
    key = jax.random.PRNGKey(0)
    kt, kx, kp = jax.random.split(key, 3)

    # --- small example (single tile) ---------------------------------------
    N, D = 8, 4
    t = jax.random.uniform(kt, (N, 1), jnp.float32, minval=0.0, maxval=365.0)
    x = jax.random.normal(kx, (N, D), jnp.float32)
    params = make_params(kp, D)

    out = jax.block_until_ready(default_qmodel_forward(t, x, params))
    ref = reference_forward(t, x, params)
    assert out.shape == (N, 3)
    # amplitude/phase reparameterization differs from cos+sin only by f32 rounding
    np.testing.assert_allclose(np.asarray(out), np.asarray(ref), rtol=1e-4, atol=1e-4)

    # --- multi-tile path (exercises grid pipelining & padding of last tile) --
    N2 = 300
    t2 = jax.random.uniform(kt, (N2, 1), jnp.float32, minval=0.0, maxval=365.0)
    x2 = jax.random.normal(kx, (N2, D), jnp.float32)
    out2 = jax.block_until_ready(default_qmodel_forward(t2, x2, params, tile_n=128))
    ref2 = reference_forward(t2, x2, params)
    assert out2.shape == (N2, 3)
    np.testing.assert_allclose(np.asarray(out2), np.asarray(ref2), rtol=1e-4, atol=1e-4)

    print("KERNEL_OK")
</pallas_src>

<mosaic_0001>
module attributes {stable_mosaic.version = 11 : i64} {
  func.func @qmodel_kernel(%arg0: i32, %arg1: memref<1x512xf32, #tpu.memory_space<vmem>>, %arg2: memref<4x512xf32, #tpu.memory_space<vmem>>, %arg3: memref<12x10xf32, #tpu.memory_space<vmem>>, %arg4: memref<3x512xf32, #tpu.memory_space<vmem>>) attributes {dimension_semantics = [#tpu.dimension_semantics<parallel>], iteration_bounds = array<i64: 1>, scalar_prefetch = 0 : i64, scratch_operands = 0 : i64, tpu.core_type = #tpu.core_type<tc>, window_params = [{transform_indices = @transform_0, window_bounds = array<i64: 1, 512>}, {transform_indices = @transform_1, window_bounds = array<i64: 4, 512>}, {pipeline_mode = #tpu.pipeline_mode<synchronous>, transform_indices = @transform_2, window_bounds = array<i64: 12, 10>}, {transform_indices = @transform_3, window_bounds = array<i64: 3, 512>}]} {
    %c0 = arith.constant 0 : index
    %c0_0 = arith.constant 0 : index
    %0 = vector.load %arg1[%c0, %c0_0] : memref<1x512xf32, #tpu.memory_space<vmem>>, vector<1x512xf32>
    %c0_1 = arith.constant 0 : index
    %c0_2 = arith.constant 0 : index
    %1 = vector.load %arg2[%c0_1, %c0_2] : memref<4x512xf32, #tpu.memory_space<vmem>>, vector<4x512xf32>
    %c0_3 = arith.constant 0 : index
    %c0_4 = arith.constant 0 : index
    %2 = vector.load %arg3[%c0_3, %c0_4] : memref<12x10xf32, #tpu.memory_space<vmem>>, vector<12x10xf32>
    %3 = vector.extract_strided_slice %2 {offsets = [0, 0], sizes = [12, 1], strides = [1, 1]} : vector<12x10xf32> to vector<12x1xf32>
    %4 = vector.extract_strided_slice %2 {offsets = [0, 1], sizes = [12, 1], strides = [1, 1]} : vector<12x10xf32> to vector<12x1xf32>
    %5 = vector.extract_strided_slice %2 {offsets = [0, 2], sizes = [12, 1], strides = [1, 1]} : vector<12x10xf32> to vector<12x1xf32>
    %6 = vector.extract_strided_slice %2 {offsets = [0, 3], sizes = [3, 1], strides = [1, 1]} : vector<12x10xf32> to vector<3x1xf32>
    %7 = vector.extract_strided_slice %2 {offsets = [0, 4], sizes = [3, 1], strides = [1, 1]} : vector<12x10xf32> to vector<3x1xf32>
    %8 = vector.extract_strided_slice %2 {offsets = [0, 5], sizes = [3, 1], strides = [1, 1]} : vector<12x10xf32> to vector<3x1xf32>
    %9 = vector.broadcast %3 : vector<12x1xf32> to vector<12x512xf32>
    %10 = vector.broadcast %0 : vector<1x512xf32> to vector<12x512xf32>
    %11 = arith.mulf %9, %10 : vector<12x512xf32>
    %12 = vector.broadcast %5 : vector<12x1xf32> to vector<12x512xf32>
    %13 = arith.addf %11, %12 : vector<12x512xf32>
    %14 = math.cos %13 : vector<12x512xf32>
    %15 = vector.broadcast %4 : vector<12x1xf32> to vector<12x512xf32>
    %16 = arith.mulf %15, %14 : vector<12x512xf32>
    %cst = arith.constant dense<0.000000e+00> : vector<512xf32>
    %17 = vector.multi_reduction <add>, %16, %cst [0] : vector<12x512xf32> to vector<512xf32>
    %18 = vector.shape_cast %17 : vector<512xf32> to vector<1x512xf32>
    %19 = vector.broadcast %6 : vector<3x1xf32> to vector<3x512xf32>
    %20 = vector.broadcast %0 : vector<1x512xf32> to vector<3x512xf32>
    %21 = arith.mulf %19, %20 : vector<3x512xf32>
    %22 = vector.broadcast %7 : vector<3x1xf32> to vector<3x512xf32>
    %23 = arith.addf %21, %22 : vector<3x512xf32>
    %24 = vector.extract_strided_slice %2 {offsets = [0, 6], sizes = [3, 1], strides = [1, 1]} : vector<12x10xf32> to vector<3x1xf32>
    %25 = vector.extract_strided_slice %1 {offsets = [0, 0], sizes = [1, 512], strides = [1, 1]} : vector<4x512xf32> to vector<1x512xf32>
    %26 = vector.broadcast %24 : vector<3x1xf32> to vector<3x512xf32>
    %27 = vector.broadcast %25 : vector<1x512xf32> to vector<3x512xf32>
    %28 = arith.mulf %26, %27 : vector<3x512xf32>
    %29 = arith.addf %23, %28 : vector<3x512xf32>
    %30 = vector.extract_strided_slice %2 {offsets = [0, 7], sizes = [3, 1], strides = [1, 1]} : vector<12x10xf32> to vector<3x1xf32>
    %31 = vector.extract_strided_slice %1 {offsets = [1, 0], sizes = [1, 512], strides = [1, 1]} : vector<4x512xf32> to vector<1x512xf32>
    %32 = vector.broadcast %30 : vector<3x1xf32> to vector<3x512xf32>
    %33 = vector.broadcast %31 : vector<1x512xf32> to vector<3x512xf32>
    %34 = arith.mulf %32, %33 : vector<3x512xf32>
    %35 = arith.addf %29, %34 : vector<3x512xf32>
    %36 = vector.extract_strided_slice %2 {offsets = [0, 8], sizes = [3, 1], strides = [1, 1]} : vector<12x10xf32> to vector<3x1xf32>
    %37 = vector.extract_strided_slice %1 {offsets = [2, 0], sizes = [1, 512], strides = [1, 1]} : vector<4x512xf32> to vector<1x512xf32>
    %38 = vector.broadcast %36 : vector<3x1xf32> to vector<3x512xf32>
    %39 = vector.broadcast %37 : vector<1x512xf32> to vector<3x512xf32>
    %40 = arith.mulf %38, %39 : vector<3x512xf32>
    %41 = arith.addf %35, %40 : vector<3x512xf32>
    %42 = vector.extract_strided_slice %2 {offsets = [0, 9], sizes = [3, 1], strides = [1, 1]} : vector<12x10xf32> to vector<3x1xf32>
    %43 = vector.extract_strided_slice %1 {offsets = [3, 0], sizes = [1, 512], strides = [1, 1]} : vector<4x512xf32> to vector<1x512xf32>
    %44 = vector.broadcast %42 : vector<3x1xf32> to vector<3x512xf32>
    %45 = vector.broadcast %43 : vector<1x512xf32> to vector<3x512xf32>
    %46 = arith.mulf %44, %45 : vector<3x512xf32>
    %47 = arith.addf %41, %46 : vector<3x512xf32>
    %48 = vector.extract_strided_slice %47 {offsets = [1, 0], sizes = [1, 512], strides = [1, 1]} : vector<3x512xf32> to vector<1x512xf32>
    %49 = arith.addf %48, %18 : vector<1x512xf32>
    %cst_5 = arith.constant 2.000000e+01 : f32
    %50 = vector.broadcast %cst_5 : f32 to vector<3x512xf32>
    %51 = arith.cmpf ogt, %47, %50 : vector<3x512xf32>
    %cst_6 = arith.constant 2.000000e+01 : f32
    %52 = vector.broadcast %cst_6 : f32 to vector<3x512xf32>
    %53 = arith.minimumf %47, %52 : vector<3x512xf32>
    %54 = math.exp %53 : vector<3x512xf32>
    %55 = math.log1p %54 : vector<3x512xf32>
    %56 = arith.select %51, %47, %55 : vector<3x512xi1>, vector<3x512xf32>
    %57 = vector.broadcast %8 : vector<3x1xf32> to vector<3x512xf32>
    %58 = arith.mulf %57, %56 : vector<3x512xf32>
    %59 = vector.broadcast %49 : vector<1x512xf32> to vector<3x512xf32>
    %60 = arith.addf %59, %58 : vector<3x512xf32>
    %cst_7 = arith.constant -1.000000e+00 : f32
    %61 = vector.broadcast %cst_7 : f32 to vector<3x512xf32>
    %62 = arith.cmpf olt, %60, %61 : vector<3x512xf32>
    %cst_8 = arith.constant -1.000000e+00 : f32
    %63 = vector.broadcast %cst_8 : f32 to vector<3x512xf32>
    %64 = arith.subf %60, %63 : vector<3x512xf32>
    %cst_9 = arith.constant 0.00999999977 : f32
    %65 = vector.broadcast %cst_9 : f32 to vector<3x512xf32>
    %66 = arith.mulf %65, %64 : vector<3x512xf32>
    %cst_10 = arith.constant -1.000000e+00 : f32
    %67 = vector.broadcast %cst_10 : f32 to vector<3x512xf32>
    %68 = arith.addf %66, %67 : vector<3x512xf32>
    %69 = arith.select %62, %68, %60 : vector<3x512xi1>, vector<3x512xf32>
    %cst_11 = arith.constant 1.000000e+00 : f32
    %70 = vector.broadcast %cst_11 : f32 to vector<3x512xf32>
    %71 = arith.cmpf ogt, %69, %70 : vector<3x512xf32>
    %cst_12 = arith.constant 1.000000e+00 : f32
    %72 = vector.broadcast %cst_12 : f32 to vector<3x512xf32>
    %73 = arith.subf %69, %72 : vector<3x512xf32>
    %cst_13 = arith.constant 0.00999999977 : f32
    %74 = vector.broadcast %cst_13 : f32 to vector<3x512xf32>
    %75 = arith.mulf %74, %73 : vector<3x512xf32>
    %cst_14 = arith.constant 1.000000e+00 : f32
    %76 = vector.broadcast %cst_14 : f32 to vector<3x512xf32>
    %77 = arith.addf %75, %76 : vector<3x512xf32>
    %78 = arith.select %71, %77, %69 : vector<3x512xi1>, vector<3x512xf32>
    %c0_15 = arith.constant 0 : index
    %c0_16 = arith.constant 0 : index
    %79 = vector.load %arg4[%c0_15, %c0_16] : memref<3x512xf32, #tpu.memory_space<vmem>>, vector<3x512xf32>
    tpu.vector_store %arg4[%c0_15, %c0_16], %78 {strides = array<i32>} : memref<3x512xf32, #tpu.memory_space<vmem>>, vector<3x512xf32>,
    return
  }
  func.func @transform_0(%arg0: i32) -> (i32, i32) {
    %c0_i32 = arith.constant 0 : i32
    %c0_i32_0 = arith.constant 0 : i32
    return %c0_i32, %arg0 : i32, i32
  }
  func.func @transform_1(%arg0: i32) -> (i32, i32) {
    %c0_i32 = arith.constant 0 : i32
    %c0_i32_0 = arith.constant 0 : i32
    return %c0_i32, %arg0 : i32, i32
  }
  func.func @transform_2(%arg0: i32) -> (i32, i32) {
    %c0_i32 = arith.constant 0 : i32
    %c0_i32_0 = arith.constant 0 : i32
    %c0_i32_1 = arith.constant 0 : i32
    return %c0_i32, %c0_i32_0 : i32, i32
  }
  func.func @transform_3(%arg0: i32) -> (i32, i32) {
    %c0_i32 = arith.constant 0 : i32
    %c0_i32_0 = arith.constant 0 : i32
    return %c0_i32, %arg0 : i32, i32
  }
}

</mosaic_0001>

<llo_original>
// kernel: tpu_custom_call.1
$region0: #{tpu_custom_call.1}
  #allocation0 [shape = 'u32[]', space=smem, size = 0x4, offset = 0x4, fixed_abs, tag = 'smem constant byte address 0x4 - core index']
  #allocation1 [shape = 'u32[72,128]{1,0:T(1,128)}', space=vmem, size = 0x9000, scoped, tag = 'internal scratch']
  %s0 = inlined_call_operand.hbm [shape: f32[1,512], index: 0, kind: input, shape index: {}]
  %s1 = inlined_call_operand.hbm [shape: f32[4,512], index: 1, kind: input, shape index: {}]
  %s2 = inlined_call_operand.hbm [shape: f32[12,10], index: 2, kind: input, shape index: {}]
  %s3 = inlined_call_operand.hbm [shape: f32[3,512], index: 3, kind: output, shape index: {}]
  %s4 = sld [smem:[#allocation0]]
  $region34: #{tpu_custom_call.1} parent=0
    _
  %s6 = ssub.s32 1, %s4
  %s7 = scalar_select 0, %s6, %s4
  $region1: #{tpu_custom_call.1} parent=0
    #allocation2 [shape = 'u8[2048]{0}', space=vmem, size = 0x800, scoped, tag = 'input window, operand 0, single buffered']
    #allocation3 [shape = 's32[1]{0}', space=sflag, size = 0x4, scoped, tag = 'scoped memory for tpu_custom_call.1']
    #allocation4 [shape = 's32[1]{0}', space=sflag, size = 0x4, scoped, tag = 'scoped memory for tpu_custom_call.1']
    #allocation5 [shape = 'u8[8192]{0}', space=vmem, size = 0x2000, scoped, tag = 'input window, operand 1, single buffered']
    #allocation6 [shape = 's32[1]{0}', space=sflag, size = 0x4, scoped, tag = 'scoped memory for tpu_custom_call.1']
    #allocation7 [shape = 'u8[8192]{0}', space=vmem, size = 0x2000, scoped, tag = 'input window, operand 2, single buffered']
    #allocation8 [shape = 'u8[8192]{0}', space=vmem, size = 0x2000, scoped, tag = 'output window, operand 0, single buffered']
    %8 = vsyncpa [#allocation3], 0
    %9 = vsyncpa [#allocation6], 0
    %10 = vsyncpa [#allocation4], 0
    // Predicated region
    $region2: #{tpu_custom_call.1} parent=1 // pred_check
      _
    $region3: #{tpu_custom_call.1} parent=1 // pred_check_branch
      %12 = sbr.rel (0) target = $region5
    $region4: #{tpu_custom_call.1} parent=1 // pred_region
      %14 = vsyncadd [#allocation3], 0
      %s16 = sshll.u32 %s0, 4
      %s17 = int_to_ptr.hbm [resolvable:$true] %s16
      %s18 = sshll.u32 [#allocation2], 4
      %s19 = int_to_ptr.vmem [resolvable:$true] %s18
      %21 = dma.hbm_to_vmem [thread:$0]  %s17, 64, %s19, [#allocation3]
    $region5: #{tpu_custom_call.1} parent=1 // pred_fallthru
      _
    // Predicated region
    $region6: #{tpu_custom_call.1} parent=1 // pred_check
      _
    $region7: #{tpu_custom_call.1} parent=1 // pred_check_branch
      %23 = sbr.rel (0) target = $region9
    $region8: #{tpu_custom_call.1} parent=1 // pred_region
      %25 = vsyncadd [#allocation6], 0
      %s27 = sshll.u32 %s1, 4
      %s28 = int_to_ptr.hbm [resolvable:$true] %s27
      %s29 = sshll.u32 [#allocation5], 4
      %s30 = int_to_ptr.vmem [resolvable:$true] %s29
      %32 = dma.hbm_to_vmem [thread:$0]  %s28, 256, %s30, [#allocation6]
    $region9: #{tpu_custom_call.1} parent=1 // pred_fallthru
      _
    // Predicated region
    $region10: #{tpu_custom_call.1} parent=1 // pred_check
      _
    $region11: #{tpu_custom_call.1} parent=1 // pred_check_branch
      %34 = sbr.rel (0) target = $region13
    $region12: #{tpu_custom_call.1} parent=1 // pred_region
      %36 = vsyncadd [#allocation6], 0
      %s37 = sshll.u32 %s2, 4
      %s38 = int_to_ptr.hbm [resolvable:$true] %s37
      %s39 = sshll.u32 [#allocation7], 4
      %s40 = int_to_ptr.vmem [resolvable:$true] %s39
      %45 = dma.hbm_to_vmem [thread:$0]  %s38, 256, %s40, [#allocation6], 128, 128, 8
    $region13: #{tpu_custom_call.1} parent=1 // pred_fallthru
      _
    // Predicated region
    $region14: #{tpu_custom_call.1} parent=1 // pred_check
      _
    $region15: #{tpu_custom_call.1} parent=1 // pred_check_branch
      %47 = sbr.rel (0) target = $region17
    $region16: #{tpu_custom_call.1} parent=1 // pred_region
      %49 = dma.done [#allocation3], 64
    $region17: #{tpu_custom_call.1} parent=1 // pred_fallthru
      _
    // Predicated region
    $region18: #{tpu_custom_call.1} parent=1 // pred_check
      _
    $region19: #{tpu_custom_call.1} parent=1 // pred_check_branch
      %51 = sbr.rel (0) target = $region21
    $region20: #{tpu_custom_call.1} parent=1 // pred_region
      %53 = dma.done [#allocation6], 256
    $region21: #{tpu_custom_call.1} parent=1 // pred_fallthru
      _
    // Predicated region
    $region22: #{tpu_custom_call.1} parent=1 // pred_check
      _
    $region23: #{tpu_custom_call.1} parent=1 // pred_check_branch
      %55 = sbr.rel (0) target = $region25
    $region24: #{tpu_custom_call.1} parent=1 // pred_region
      %57 = dma.done [#allocation6], 256
    $region25: #{tpu_custom_call.1} parent=1 // pred_fallthru
      _
    %v58 = vld [vmem:[#allocation2] sm:$0xf]
    %v59 = vld [vmem:[#allocation5] sm:$0xff]
    %v60 = vld [vmem:[#allocation5 + $0x8] sm:$0xff]
    %v61 = vld [vmem:[#allocation7] sm:$0xff]
    %v62 = vld [vmem:[#allocation7 + $0x8] sm:$0xf]
    %64 = vset.pattern.permute.xlu0 0
    %65 = vperm.xlu0 %64, %v61
    %v66 = vpop.permute.xlu0 %65
    %69 = vset.pattern.permute.xlu0 0
    %70 = vperm.xlu0 %69, %v62
    %v71 = vpop.permute.xlu0 %70
    %v74 = vperm.slane %v58, 0
    %v75 = vperm.slane %v58, 1
    %v76 = vperm.slane %v58, 2
    %v77 = vperm.slane %v58, 3
    %v82 = vmul.f32 %v66, %v74
    %v83 = vmul.f32 %v66, %v75
    %v84 = vmul.f32 %v66, %v76
    %v85 = vmul.f32 %v66, %v77
    %v86 = vmul.f32 %v71, %v74
    %v87 = vmul.f32 %v71, %v75
    %v88 = vmul.f32 %v71, %v76
    %v89 = vmul.f32 %v71, %v77
    %90 = vset.pattern.permute.xlu0 2
    %91 = vperm.xlu0 %90, %v61
    %v92 = vpop.permute.xlu0 %91
    %94 = vset.pattern.permute.xlu0 2
    %95 = vperm.xlu0 %94, %v62
    %v96 = vpop.permute.xlu0 %95
    %v98 = vadd.f32 %v82, %v92
    %v99 = vadd.f32 %v83, %v92
    %v100 = vadd.f32 %v84, %v92
    %v101 = vadd.f32 %v85, %v92
    %v102 = vadd.f32 %v86, %v96
    %v103 = vadd.f32 %v87, %v96
    %v104 = vadd.f32 %v88, %v96
    %v105 = vadd.f32 %v89, %v96
    %v106 = vand.u32 2147483647, %v98
    %vm107 = vcmp.le.f32.partialorder %v106, 0.7853982
    %vm108 = vcmp.lt.s32.totalorder %v98, 0
    %v109 = vand.u32 %v98, 2139095040
    %v110 = vshrl.u32 %v109, 23
    %v111 = vsub.s32 %v110, 127
    %v112 = vand.u32 2147483647, %v98
    %v113 = vand.u32 %v112, 8388607
    %v114 = vor.u32 %v113, 8388608
    %v115 = vsub.s32 0, %v114
    %v116 = vadd.s32 %v111, 1
    %vm117 = vcmp.gt.s32.totalorder %v116, 0
    %v118 = vsel %vm117, %v116, 0
    %v119 = vshrl.u32 %v118, 5
    %v120 = vand.u32 %v118, 31
    %v121 = vsub.s32 32, %v120
    %v122 = vshrl.u32 683565275, %v121
    %v123 = vshll.u32 683565275, %v120
    %v124 = vshrl.u32 2475754826, %v121
    %v125 = vor.u32 %v123, %v124
    %v126 = vshll.u32 2475754826, %v120
    %v127 = vshrl.u32 2131351028, %v121
    %v128 = vor.u32 %v126, %v127
    %v129 = vshll.u32 2131351028, %v120
    %v130 = vshrl.u32 2102212464, %v121
    %v131 = vor.u32 %v129, %v130
    %v132 = vshll.u32 2102212464, %v120
    %v133 = vshrl.u32 920167782, %v121
    %v134 = vor.u32 %v132, %v133
    %v135 = vshll.u32 920167782, %v120
    %v136 = vshrl.u32 1326507024, %v121
    %v137 = vor.u32 %v135, %v136
    %vm138 = vcmp.lt.s32.totalorder %v119, 1
    %vm139 = vcmp.lt.s32.totalorder %v119, 2
    %vm140 = vcmp.lt.s32.totalorder %v119, 3
    %vm141 = vcmp.lt.s32.totalorder %v119, 4
    %v142 = vsel %vm138, %v122, %v125
    %v143 = vsel %vm141, %v131, 2102212464
    %v144 = vsel %vm140, %v128, %v143
    %v145 = vsel %vm139, %v142, %v144
    %v146 = vsel %vm138, %v125, %v128
    %v147 = vsel %vm141, %v134, 920167782
    %v148 = vsel %vm140, %v131, %v147
    %v149 = vsel %vm139, %v146, %v148
    %v150 = vsel %vm138, %v128, %v131
    %v151 = vsel %vm141, %v137, 1326507024
    %v152 = vsel %vm140, %v134, %v151
    %v153 = vsel %vm139, %v150, %v152
    %v154 = vshll.u32 %v114, 8
    %v155 = vand.u32 %v154, 65535
    %v156 = vshrl.u32 %v154, 16
    %v157 = vand.u32 %v153, 65535
    %v158 = vshrl.u32 %v153, 16
    %v159 = vmul.u32 %v155, %v157
    %v160 = vmul.u32 %v155, %v158
    %v161 = vmul.u32 %v156, %v157
    %v162 = vmul.u32 %v156, %v158
    %v163 = vshll.u32 %v160, 16
    %v164 = vshrl.u32 %v160, 16
    %v165 = vshll.u32 %v161, 16
    %v166 = vshrl.u32 %v161, 16
    %vm167 = vc.u32 %v159, %v163
    %v168 = vsel %vm167, 1, 0
    %v169 = vadd.s32 %v159, %v163
    %v170 = vadd.s32 %v162, %v168
    %vm171 = vc.u32 %v169, %v165
    %v172 = vsel %vm171, 1, 0
    %v173 = vadd.s32 %v169, %v165
    %v174 = vadd.s32 %v170, %v172
    %v175 = vadd.s32 %v174, %v164
    %v176 = vadd.s32 %v175, %v166
    %v177 = vand.u32 %v154, 65535
    %v178 = vshrl.u32 %v154, 16
    %v179 = vand.u32 %v149, 65535
    %v180 = vshrl.u32 %v149, 16
    %v181 = vmul.u32 %v177, %v179
    %v182 = vmul.u32 %v177, %v180
    %v183 = vmul.u32 %v178, %v179
    %v184 = vmul.u32 %v178, %v180
    %v185 = vshll.u32 %v182, 16
    %v186 = vshrl.u32 %v182, 16
    %v187 = vshll.u32 %v183, 16
    %v188 = vshrl.u32 %v183, 16
    %vm189 = vc.u32 %v181, %v185
    %v190 = vsel %vm189, 1, 0
    %v191 = vadd.s32 %v181, %v185
    %v192 = vadd.s32 %v184, %v190
    %vm193 = vc.u32 %v191, %v187
    %v194 = vsel %vm193, 1, 0
    %v195 = vadd.s32 %v191, %v187
    %v196 = vadd.s32 %v192, %v194
    %v197 = vadd.s32 %v196, %v186
    %v198 = vadd.s32 %v197, %v188
    %v199 = vmul.u32 %v154, %v145
    %v200 = vadd.s32 %v176, %v195
    %vm201 = vc.u32 %v176, %v195
    %v202 = vadd.s32 %v198, 1
    %v203 = vsel %vm201, %v202, %v198
    %v204 = vadd.s32 %v199, %v203
    %v205 = vadd.s32 %v204, 536870912
    %v206 = vshrl.u32 %v205, 30
    %v207 = vshll.u32 %v206, 30
    %v208 = vsub.s32 %v204, %v207
    %vm209 = vcmp.lt.s32.totalorder %v208, 0
    %v210 = vsub.s32 0, %v208
    %v211 = vsel %vm209, %v210, %v208
    %v212 = vclz %v211
    %v213 = vsub.s32 %v212, 2
    %vm214 = vcmp.gt.s32.totalorder 0, %v213
    %v215 = vsel %vm214, 0, %v213
    %v216 = vsub.s32 32, %v215
    %v217 = vshll.u32 %v208, %v215
    %v218 = vshrl.u32 %v200, %v216
    %v219 = vor.u32 %v217, %v218
    %v220 = vsub.s32 4294967266, %v215
    %v221 = vadd.s32 %v220, 127
    %v222 = vshll.u32 %v221, 23
    %v223 = vor.u32 4788187, %v222
    %v224 = vand.u32 2147483647, %v223
    %v226 = vcvt.s32.f32 %v219
    %v227 = vmul.f32 %v226, %v224
    %v228 = vxor.u32 %v227, 2147483648
    %v229 = vsel %vm108, %v228, %v227
    %v230 = vsub.s32 4, %v206
    %v231 = vsel %vm108, %v230, %v206
    %v232 = vsel %vm107, %v98, %v229
    %v233 = vsel %vm107, 0, %v231
    %v234 = vmul.f32 %v232, %v232
    %v235 = vmul.f32 %v234, -0.001358992
    %v236 = vadd.f32 %v235, 0.041655596
    %v237 = vmul.f32 %v234, %v236
    %v238 = vadd.f32 %v237, -0.4999988
    %v239 = vmul.f32 %v234, %v238
    %v240 = vadd.f32 1.0, %v239
    %v241 = vmul.f32 %v232, %v232
    %v242 = vmul.f32 %v241, -0.00019511016
    %v243 = vadd.f32 %v242, 0.008332121
    %v244 = vmul.f32 %v241, %v243
    %v245 = vadd.f32 %v244, -0.16666654
    %v246 = vmul.f32 %v241, %v245
    %v247 = vadd.f32 %v246, 1.0
    %v248 = vmul.f32 %v247, %v232
    %vm249 = vweird.f32 %v98
    %v250 = vand.u32 %v233, 3
    %vm251 = vcmp.lt.s32.totalorder %v250, 2
    %vm252 = vcmp.eq.s32.totalorder %v250, 0
    %v253 = vxor.u32 %v248, 2147483648
    %v254 = vsel %vm252, %v240, %v253
    %vm255 = vcmp.eq.s32.totalorder %v250, 2
    %v256 = vxor.u32 %v240, 2147483648
    %v257 = vsel %vm255, %v256, %v248
    %v258 = vsel %vm251, %v254, %v257
    %v259 = vsel %vm249, nan, %v258
    %v260 = vand.u32 2147483647, %v99
    %vm261 = vcmp.le.f32.partialorder %v260, 0.7853982
    %vm262 = vcmp.lt.s32.totalorder %v99, 0
    %v263 = vand.u32 %v99, 2139095040
    %v264 = vshrl.u32 %v263, 23
    %v265 = vsub.s32 %v264, 127
    %v266 = vand.u32 2147483647, %v99
    %v267 = vand.u32 %v266, 8388607
    %v268 = vor.u32 %v267, 8388608
    %v269 = vsub.s32 0, %v268
    %v270 = vadd.s32 %v265, 1
    %vm271 = vcmp.gt.s32.totalorder %v270, 0
    %v272 = vsel %vm271, %v270, 0
    %v273 = vshrl.u32 %v272, 5
    %v274 = vand.u32 %v272, 31
    %v275 = vsub.s32 32, %v274
    %v276 = vshrl.u32 683565275, %v275
    %v277 = vshll.u32 683565275, %v274
    %v278 = vshrl.u32 2475754826, %v275
    %v279 = vor.u32 %v277, %v278
    %v280 = vshll.u32 2475754826, %v274
    %v281 = vshrl.u32 2131351028, %v275
    %v282 = vor.u32 %v280, %v281
    %v283 = vshll.u32 2131351028, %v274
    %v284 = vshrl.u32 2102212464, %v275
    %v285 = vor.u32 %v283, %v284
    %v286 = vshll.u32 2102212464, %v274
    %v287 = vshrl.u32 920167782, %v275
    %v288 = vor.u32 %v286, %v287
    %v289 = vshll.u32 920167782, %v274
    %v290 = vshrl.u32 1326507024, %v275
    %v291 = vor.u32 %v289, %v290
    %vm292 = vcmp.lt.s32.totalorder %v273, 1
    %vm293 = vcmp.lt.s32.totalorder %v273, 2
    %vm294 = vcmp.lt.s32.totalorder %v273, 3
    %vm295 = vcmp.lt.s32.totalorder %v273, 4
    %v296 = vsel %vm292, %v276, %v279
    %v297 = vsel %vm295, %v285, 2102212464
    %v298 = vsel %vm294, %v282, %v297
    %v299 = vsel %vm293, %v296, %v298
    %v300 = vsel %vm292, %v279, %v282
    %v301 = vsel %vm295, %v288, 920167782
    %v302 = vsel %vm294, %v285, %v301
    %v303 = vsel %vm293, %v300, %v302
    %v304 = vsel %vm292, %v282, %v285
    %v305 = vsel %vm295, %v291, 1326507024
    %v306 = vsel %vm294, %v288, %v305
    %v307 = vsel %vm293, %v304, %v306
    %v308 = vshll.u32 %v268, 8
    %v309 = vand.u32 %v308, 65535
    %v310 = vshrl.u32 %v308, 16
    %v311 = vand.u32 %v307, 65535
    %v312 = vshrl.u32 %v307, 16
    %v313 = vmul.u32 %v309, %v311
    %v314 = vmul.u32 %v309, %v312
    %v315 = vmul.u32 %v310, %v311
    %v316 = vmul.u32 %v310, %v312
    %v317 = vshll.u32 %v314, 16
    %v318 = vshrl.u32 %v314, 16
    %v319 = vshll.u32 %v315, 16
    %v320 = vshrl.u32 %v315, 16
    %vm321 = vc.u32 %v313, %v317
    %v322 = vsel %vm321, 1, 0
    %v323 = vadd.s32 %v313, %v317
    %v324 = vadd.s32 %v316, %v322
    %vm325 = vc.u32 %v323, %v319
    %v326 = vsel %vm325, 1, 0
    %v327 = vadd.s32 %v323, %v319
    %v328 = vadd.s32 %v324, %v326
    %v329 = vadd.s32 %v328, %v318
    %v330 = vadd.s32 %v329, %v320
    %v331 = vand.u32 %v308, 65535
    %v332 = vshrl.u32 %v308, 16
    %v333 = vand.u32 %v303, 65535
    %v334 = vshrl.u32 %v303, 16
    %v335 = vmul.u32 %v331, %v333
    %v336 = vmul.u32 %v331, %v334
    %v337 = vmul.u32 %v332, %v333
    %v338 = vmul.u32 %v332, %v334
    %v339 = vshll.u32 %v336, 16
    %v340 = vshrl.u32 %v336, 16
    %v341 = vshll.u32 %v337, 16
    %v342 = vshrl.u32 %v337, 16
    %vm343 = vc.u32 %v335, %v339
    %v344 = vsel %vm343, 1, 0
    %v345 = vadd.s32 %v335, %v339
    %v346 = vadd.s32 %v338, %v344
    %vm347 = vc.u32 %v345, %v341
    %v348 = vsel %vm347, 1, 0
    %v349 = vadd.s32 %v345, %v341
    %v350 = vadd.s32 %v346, %v348
    %v351 = vadd.s32 %v350, %v340
    %v352 = vadd.s32 %v351, %v342
    %v353 = vmul.u32 %v308, %v299
    %v354 = vadd.s32 %v330, %v349
    %vm355 = vc.u32 %v330, %v349
    %v356 = vadd.s32 %v352, 1
    %v357 = vsel %vm355, %v356, %v352
    %v358 = vadd.s32 %v353, %v357
    %v359 = vadd.s32 %v358, 536870912
    %v360 = vshrl.u32 %v359, 30
    %v361 = vshll.u32 %v360, 30
    %v362 = vsub.s32 %v358, %v361
    %vm363 = vcmp.lt.s32.totalorder %v362, 0
    %v364 = vsub.s32 0, %v362
    %v365 = vsel %vm363, %v364, %v362
    %v366 = vclz %v365
    %v367 = vsub.s32 %v366, 2
    %vm368 = vcmp.gt.s32.totalorder 0, %v367
    %v369 = vsel %vm368, 0, %v367
    %v370 = vsub.s32 32, %v369
    %v371 = vshll.u32 %v362, %v369
    %v372 = vshrl.u32 %v354, %v370
    %v373 = vor.u32 %v371, %v372
    %v374 = vsub.s32 4294967266, %v369
    %v375 = vadd.s32 %v374, 127
    %v376 = vshll.u32 %v375, 23
    %v377 = vor.u32 4788187, %v376
    %v378 = vand.u32 2147483647, %v377
    %v380 = vcvt.s32.f32 %v373
    %v381 = vmul.f32 %v380, %v378
    %v382 = vxor.u32 %v381, 2147483648
    %v383 = vsel %vm262, %v382, %v381
    %v384 = vsub.s32 4, %v360
    %v385 = vsel %vm262, %v384, %v360
    %v386 = vsel %vm261, %v99, %v383
    %v387 = vsel %vm261, 0, %v385
    %v388 = vmul.f32 %v386, %v386
    %v389 = vmul.f32 %v388, -0.001358992
    %v390 = vadd.f32 %v389, 0.041655596
    %v391 = vmul.f32 %v388, %v390
    %v392 = vadd.f32 %v391, -0.4999988
    %v393 = vmul.f32 %v388, %v392
    %v394 = vadd.f32 1.0, %v393
    %v395 = vmul.f32 %v386, %v386
    %v396 = vmul.f32 %v395, -0.00019511016
    %v397 = vadd.f32 %v396, 0.008332121
    %v398 = vmul.f32 %v395, %v397
    %v399 = vadd.f32 %v398, -0.16666654
    %v400 = vmul.f32 %v395, %v399
    %v401 = vadd.f32 %v400, 1.0
    %v402 = vmul.f32 %v401, %v386
    %vm403 = vweird.f32 %v99
    %v404 = vand.u32 %v387, 3
    %vm405 = vcmp.lt.s32.totalorder %v404, 2
    %vm406 = vcmp.eq.s32.totalorder %v404, 0
    %v407 = vxor.u32 %v402, 2147483648
    %v408 = vsel %vm406, %v394, %v407
    %vm409 = vcmp.eq.s32.totalorder %v404, 2
    %v410 = vxor.u32 %v394, 2147483648
    %v411 = vsel %vm409, %v410, %v402
    %v412 = vsel %vm405, %v408, %v411
    %v413 = vsel %vm403, nan, %v412
    %v414 = vand.u32 2147483647, %v100
    %vm415 = vcmp.le.f32.partialorder %v414, 0.7853982
    %vm416 = vcmp.lt.s32.totalorder %v100, 0
    %v417 = vand.u32 %v100, 2139095040
    %v418 = vshrl.u32 %v417, 23
    %v419 = vsub.s32 %v418, 127
    %v420 = vand.u32 2147483647, %v100
    %v421 = vand.u32 %v420, 8388607
    %v422 = vor.u32 %v421, 8388608
    %v423 = vsub.s32 0, %v422
    %v424 = vadd.s32 %v419, 1
    %vm425 = vcmp.gt.s32.totalorder %v424, 0
    %v426 = vsel %vm425, %v424, 0
    %v427 = vshrl.u32 %v426, 5
    %v428 = vand.u32 %v426, 31
    %v429 = vsub.s32 32, %v428
    %v430 = vshrl.u32 683565275, %v429
    %v431 = vshll.u32 683565275, %v428
    %v432 = vshrl.u32 2475754826, %v429
    %v433 = vor.u32 %v431, %v432
    %v434 = vshll.u32 2475754826, %v428
    %v435 = vshrl.u32 2131351028, %v429
    %v436 = vor.u32 %v434, %v435
    %v437 = vshll.u32 2131351028, %v428
    %v438 = vshrl.u32 2102212464, %v429
    %v439 = vor.u32 %v437, %v438
    %v440 = vshll.u32 2102212464, %v428
    %v441 = vshrl.u32 920167782, %v429
    %v442 = vor.u32 %v440, %v441
    %v443 = vshll.u32 920167782, %v428
    %v444 = vshrl.u32 1326507024, %v429
    %v445 = vor.u32 %v443, %v444
    %vm446 = vcmp.lt.s32.totalorder %v427, 1
    %vm447 = vcmp.lt.s32.totalorder %v427, 2
    %vm448 = vcmp.lt.s32.totalorder %v427, 3
    %vm449 = vcmp.lt.s32.totalorder %v427, 4
    %v450 = vsel %vm446, %v430, %v433
    %v451 = vsel %vm449, %v439, 2102212464
    %v452 = vsel %vm448, %v436, %v451
    %v453 = vsel %vm447, %v450, %v452
    %v454 = vsel %vm446, %v433, %v436
    %v455 = vsel %vm449, %v442, 920167782
    %v456 = vsel %vm448, %v439, %v455
    %v457 = vsel %vm447, %v454, %v456
    %v458 = vsel %vm446, %v436, %v439
    %v459 = vsel %vm449, %v445, 1326507024
    %v460 = vsel %vm448, %v442, %v459
    %v461 = vsel %vm447, %v458, %v460
    %v462 = vshll.u32 %v422, 8
    %v463 = vand.u32 %v462, 65535
    %v464 = vshrl.u32 %v462, 16
    %v465 = vand.u32 %v461, 65535
    %v466 = vshrl.u32 %v461, 16
    %v467 = vmul.u32 %v463, %v465
    %v468 = vmul.u32 %v463, %v466
    %v469 = vmul.u32 %v464, %v465
    %v470 = vmul.u32 %v464, %v466
    %v471 = vshll.u32 %v468, 16
    %v472 = vshrl.u32 %v468, 16
    %v473 = vshll.u32 %v469, 16
    %v474 = vshrl.u32 %v469, 16
    %vm475 = vc.u32 %v467, %v471
    %v476 = vsel %vm475, 1, 0
    %v477 = vadd.s32 %v467, %v471
    %v478 = vadd.s32 %v470, %v476
    %vm479 = vc.u32 %v477, %v473
    %v480 = vsel %vm479, 1, 0
    %v481 = vadd.s32 %v477, %v473
    %v482 = vadd.s32 %v478, %v480
    %v483 = vadd.s32 %v482, %v472
    %v484 = vadd.s32 %v483, %v474
    %v485 = vand.u32 %v462, 65535
    %v486 = vshrl.u32 %v462, 16
    %v487 = vand.u32 %v457, 65535
    %v488 = vshrl.u32 %v457, 16
    %v489 = vmul.u32 %v485, %v487
    %v490 = vmul.u32 %v485, %v488
    %v491 = vmul.u32 %v486, %v487
    %v492 = vmul.u32 %v486, %v488
    %v493 = vshll.u32 %v490, 16
    %v494 = vshrl.u32 %v490, 16
    %v495 = vshll.u32 %v491, 16
    %v496 = vshrl.u32 %v491, 16
    %vm497 = vc.u32 %v489, %v493
    %v498 = vsel %vm497, 1, 0
    %v499 = vadd.s32 %v489, %v493
    %v500 = vadd.s32 %v492, %v498
    %vm501 = vc.u32 %v499, %v495
    %v502 = vsel %vm501, 1, 0
    %v503 = vadd.s32 %v499, %v495
    %v504 = vadd.s32 %v500, %v502
    %v505 = vadd.s32 %v504, %v494
    %v506 = vadd.s32 %v505, %v496
    %v507 = vmul.u32 %v462, %v453
    %v508 = vadd.s32 %v484, %v503
    %vm509 = vc.u32 %v484, %v503
    %v510 = vadd.s32 %v506, 1
    %v511 = vsel %vm509, %v510, %v506
    %v512 = vadd.s32 %v507, %v511
    %v513 = vadd.s32 %v512, 536870912
    %v514 = vshrl.u32 %v513, 30
    %v515 = vshll.u32 %v514, 30
    %v516 = vsub.s32 %v512, %v515
    %vm517 = vcmp.lt.s32.totalorder %v516, 0
    %v518 = vsub.s32 0, %v516
    %v519 = vsel %vm517, %v518, %v516
    %v520 = vclz %v519
    %v521 = vsub.s32 %v520, 2
    %vm522 = vcmp.gt.s32.totalorder 0, %v521
    %v523 = vsel %vm522, 0, %v521
    %v524 = vsub.s32 32, %v523
    %v525 = vshll.u32 %v516, %v523
    %v526 = vshrl.u32 %v508, %v524
    %v527 = vor.u32 %v525, %v526
    %v528 = vsub.s32 4294967266, %v523
    %v529 = vadd.s32 %v528, 127
    %v530 = vshll.u32 %v529, 23
    %v531 = vor.u32 4788187, %v530
    %v532 = vand.u32 2147483647, %v531
    %v534 = vcvt.s32.f32 %v527
    %v535 = vmul.f32 %v534, %v532
    %v536 = vxor.u32 %v535, 2147483648
    %v537 = vsel %vm416, %v536, %v535
    %v538 = vsub.s32 4, %v514
    %v539 = vsel %vm416, %v538, %v514
    %v540 = vsel %vm415, %v100, %v537
    %v541 = vsel %vm415, 0, %v539
    %v542 = vmul.f32 %v540, %v540
    %v543 = vmul.f32 %v542, -0.001358992
    %v544 = vadd.f32 %v543, 0.041655596
    %v545 = vmul.f32 %v542, %v544
    %v546 = vadd.f32 %v545, -0.4999988
    %v547 = vmul.f32 %v542, %v546
    %v548 = vadd.f32 1.0, %v547
    %v549 = vmul.f32 %v540, %v540
    %v550 = vmul.f32 %v549, -0.00019511016
    %v551 = vadd.f32 %v550, 0.008332121
    %v552 = vmul.f32 %v549, %v551
    %v553 = vadd.f32 %v552, -0.16666654
    %v554 = vmul.f32 %v549, %v553
    %v555 = vadd.f32 %v554, 1.0
    %v556 = vmul.f32 %v555, %v540
    %vm557 = vweird.f32 %v100
    %v558 = vand.u32 %v541, 3
    %vm559 = vcmp.lt.s32.totalorder %v558, 2
    %vm560 = vcmp.eq.s32.totalorder %v558, 0
    %v561 = vxor.u32 %v556, 2147483648
    %v562 = vsel %vm560, %v548, %v561
    %vm563 = vcmp.eq.s32.totalorder %v558, 2
    %v564 = vxor.u32 %v548, 2147483648
    %v565 = vsel %vm563, %v564, %v556
    %v566 = vsel %vm559, %v562, %v565
    %v567 = vsel %vm557, nan, %v566
    %v568 = vand.u32 2147483647, %v101
    %vm569 = vcmp.le.f32.partialorder %v568, 0.7853982
    %vm570 = vcmp.lt.s32.totalorder %v101, 0
    %v571 = vand.u32 %v101, 2139095040
    %v572 = vshrl.u32 %v571, 23
    %v573 = vsub.s32 %v572, 127
    %v574 = vand.u32 2147483647, %v101
    %v575 = vand.u32 %v574, 8388607
    %v576 = vor.u32 %v575, 8388608
    %v577 = vsub.s32 0, %v576
    %v578 = vadd.s32 %v573, 1
    %vm579 = vcmp.gt.s32.totalorder %v578, 0
    %v580 = vsel %vm579, %v578, 0
    %v581 = vshrl.u32 %v580, 5
    %v582 = vand.u32 %v580, 31
    %v583 = vsub.s32 32, %v582
    %v584 = vshrl.u32 683565275, %v583
    %v585 = vshll.u32 683565275, %v582
    %v586 = vshrl.u32 2475754826, %v583
    %v587 = vor.u32 %v585, %v586
    %v588 = vshll.u32 2475754826, %v582
    %v589 = vshrl.u32 2131351028, %v583
    %v590 = vor.u32 %v588, %v589
    %v591 = vshll.u32 2131351028, %v582
    %v592 = vshrl.u32 2102212464, %v583
    %v593 = vor.u32 %v591, %v592
    %v594 = vshll.u32 2102212464, %v582
    %v595 = vshrl.u32 920167782, %v583
    %v596 = vor.u32 %v594, %v595
    %v597 = vshll.u32 920167782, %v582
    %v598 = vshrl.u32 1326507024, %v583
    %v599 = vor.u32 %v597, %v598
    %vm600 = vcmp.lt.s32.totalorder %v581, 1
    %vm601 = vcmp.lt.s32.totalorder %v581, 2
    %vm602 = vcmp.lt.s32.totalorder %v581, 3
    %vm603 = vcmp.lt.s32.totalorder %v581, 4
    %v604 = vsel %vm600, %v584, %v587
    %v605 = vsel %vm603, %v593, 2102212464
    %v606 = vsel %vm602, %v590, %v605
    %v607 = vsel %vm601, %v604, %v606
    %v608 = vsel %vm600, %v587, %v590
    %v609 = vsel %vm603, %v596, 920167782
    %v610 = vsel %vm602, %v593, %v609
    %v611 = vsel %vm601, %v608, %v610
    %v612 = vsel %vm600, %v590, %v593
    %v613 = vsel %vm603, %v599, 1326507024
    %v614 = vsel %vm602, %v596, %v613
    %v615 = vsel %vm601, %v612, %v614
    %v616 = vshll.u32 %v576, 8
    %v617 = vand.u32 %v616, 65535
    %v618 = vshrl.u32 %v616, 16
    %v619 = vand.u32 %v615, 65535
    %v620 = vshrl.u32 %v615, 16
    %v621 = vmul.u32 %v617, %v619
    %v622 = vmul.u32 %v617, %v620
    %v623 = vmul.u32 %v618, %v619
    %v624 = vmul.u32 %v618, %v620
    %v625 = vshll.u32 %v622, 16
    %v626 = vshrl.u32 %v622, 16
    %v627 = vshll.u32 %v623, 16
    %v628 = vshrl.u32 %v623, 16
    %vm629 = vc.u32 %v621, %v625
    %v630 = vsel %vm629, 1, 0
    %v631 = vadd.s32 %v621, %v625
    %v632 = vadd.s32 %v624, %v630
    %vm633 = vc.u32 %v631, %v627
    %v634 = vsel %vm633, 1, 0
    %v635 = vadd.s32 %v631, %v627
    %v636 = vadd.s32 %v632, %v634
    %v637 = vadd.s32 %v636, %v626
    %v638 = vadd.s32 %v637, %v628
    %v639 = vand.u32 %v616, 65535
    %v640 = vshrl.u32 %v616, 16
    %v641 = vand.u32 %v611, 65535
    %v642 = vshrl.u32 %v611, 16
    %v643 = vmul.u32 %v639, %v641
    %v644 = vmul.u32 %v639, %v642
    %v645 = vmul.u32 %v640, %v641
    %v646 = vmul.u32 %v640, %v642
    %v647 = vshll.u32 %v644, 16
    %v648 = vshrl.u32 %v644, 16
    %v649 = vshll.u32 %v645, 16
    %v650 = vshrl.u32 %v645, 16
    %vm651 = vc.u32 %v643, %v647
    %v652 = vsel %vm651, 1, 0
    %v653 = vadd.s32 %v643, %v647
    %v654 = vadd.s32 %v646, %v652
    %vm655 = vc.u32 %v653, %v649
    %v656 = vsel %vm655, 1, 0
    %v657 = vadd.s32 %v653, %v649
    %v658 = vadd.s32 %v654, %v656
    %v659 = vadd.s32 %v658, %v648
    %v660 = vadd.s32 %v659, %v650
    %v661 = vmul.u32 %v616, %v607
    %v662 = vadd.s32 %v638, %v657
    %vm663 = vc.u32 %v638, %v657
    %v664 = vadd.s32 %v660, 1
    %v665 = vsel %vm663, %v664, %v660
    %v666 = vadd.s32 %v661, %v665
    %v667 = vadd.s32 %v666, 536870912
    %v668 = vshrl.u32 %v667, 30
    %v669 = vshll.u32 %v668, 30
    %v670 = vsub.s32 %v666, %v669
    %vm671 = vcmp.lt.s32.totalorder %v670, 0
    %v672 = vsub.s32 0, %v670
    %v673 = vsel %vm671, %v672, %v670
    %v674 = vclz %v673
    %v675 = vsub.s32 %v674, 2
    %vm676 = vcmp.gt.s32.totalorder 0, %v675
    %v677 = vsel %vm676, 0, %v675
    %v678 = vsub.s32 32, %v677
    %v679 = vshll.u32 %v670, %v677
    %v680 = vshrl.u32 %v662, %v678
    %v681 = vor.u32 %v679, %v680
    %v682 = vsub.s32 4294967266, %v677
    %v683 = vadd.s32 %v682, 127
    %v684 = vshll.u32 %v683, 23
    %v685 = vor.u32 4788187, %v684
    %v686 = vand.u32 2147483647, %v685
    %v688 = vcvt.s32.f32 %v681
    %v689 = vmul.f32 %v688, %v686
    %v690 = vxor.u32 %v689, 2147483648
    %v691 = vsel %vm570, %v690, %v689
    %v692 = vsub.s32 4, %v668
    %v693 = vsel %vm570, %v692, %v668
    %v694 = vsel %vm569, %v101, %v691
    %v695 = vsel %vm569, 0, %v693
    %v696 = vmul.f32 %v694, %v694
    %v697 = vmul.f32 %v696, -0.001358992
    %v698 = vadd.f32 %v697, 0.041655596
    %v699 = vmul.f32 %v696, %v698
    %v700 = vadd.f32 %v699, -0.4999988
    %v701 = vmul.f32 %v696, %v700
    %v702 = vadd.f32 1.0, %v701
    %v703 = vmul.f32 %v694, %v694
    %v704 = vmul.f32 %v703, -0.00019511016
    %v705 = vadd.f32 %v704, 0.008332121
    %v706 = vmul.f32 %v703, %v705
    %v707 = vadd.f32 %v706, -0.16666654
    %v708 = vmul.f32 %v703, %v707
    %v709 = vadd.f32 %v708, 1.0
    %v710 = vmul.f32 %v709, %v694
    %vm711 = vweird.f32 %v101
    %v712 = vand.u32 %v695, 3
    %vm713 = vcmp.lt.s32.totalorder %v712, 2
    %vm714 = vcmp.eq.s32.totalorder %v712, 0
    %v715 = vxor.u32 %v710, 2147483648
    %v716 = vsel %vm714, %v702, %v715
    %vm717 = vcmp.eq.s32.totalorder %v712, 2
    %v718 = vxor.u32 %v702, 2147483648
    %v719 = vsel %vm717, %v718, %v710
    %v720 = vsel %vm713, %v716, %v719
    %v721 = vsel %vm711, nan, %v720
    %v722 = vand.u32 2147483647, %v102
    %vm723 = vcmp.le.f32.partialorder %v722, 0.7853982
    %vm724 = vcmp.lt.s32.totalorder %v102, 0
    %v725 = vand.u32 %v102, 2139095040
    %v726 = vshrl.u32 %v725, 23
    %v727 = vsub.s32 %v726, 127
    %v728 = vand.u32 2147483647, %v102
    %v729 = vand.u32 %v728, 8388607
    %v730 = vor.u32 %v729, 8388608
    %v731 = vsub.s32 0, %v730
    %v732 = vadd.s32 %v727, 1
    %vm733 = vcmp.gt.s32.totalorder %v732, 0
    %v734 = vsel %vm733, %v732, 0
    %v735 = vshrl.u32 %v734, 5
    %v736 = vand.u32 %v734, 31
    %v737 = vsub.s32 32, %v736
    %v738 = vshrl.u32 683565275, %v737
    %v739 = vshll.u32 683565275, %v736
    %v740 = vshrl.u32 2475754826, %v737
    %v741 = vor.u32 %v739, %v740
    %v742 = vshll.u32 2475754826, %v736
    %v743 = vshrl.u32 2131351028, %v737
    %v744 = vor.u32 %v742, %v743
    %v745 = vshll.u32 2131351028, %v736
    %v746 = vshrl.u32 2102212464, %v737
    %v747 = vor.u32 %v745, %v746
    %v748 = vshll.u32 2102212464, %v736
    %v749 = vshrl.u32 920167782, %v737
    %v750 = vor.u32 %v748, %v749
    %v751 = vshll.u32 920167782, %v736
    %v752 = vshrl.u32 1326507024, %v737
    %v753 = vor.u32 %v751, %v752
    %vm754 = vcmp.lt.s32.totalorder %v735, 1
    %vm755 = vcmp.lt.s32.totalorder %v735, 2
    %vm756 = vcmp.lt.s32.totalorder %v735, 3
    %vm757 = vcmp.lt.s32.totalorder %v735, 4
    %v758 = vsel %vm754, %v738, %v741
    %v759 = vsel %vm757, %v747, 2102212464
    %v760 = vsel %vm756, %v744, %v759
    %v761 = vsel %vm755, %v758, %v760
    %v762 = vsel %vm754, %v741, %v744
    %v763 = vsel %vm757, %v750, 920167782
    %v764 = vsel %vm756, %v747, %v763
    %v765 = vsel %vm755, %v762, %v764
    %v766 = vsel %vm754, %v744, %v747
    %v767 = vsel %vm757, %v753, 1326507024
    %v768 = vsel %vm756, %v750, %v767
    %v769 = vsel %vm755, %v766, %v768
    %v770 = vshll.u32 %v730, 8
    %v771 = vand.u32 %v770, 65535
    %v772 = vshrl.u32 %v770, 16
    %v773 = vand.u32 %v769, 65535
    %v774 = vshrl.u32 %v769, 16
    %v775 = vmul.u32 %v771, %v773
    %v776 = vmul.u32 %v771, %v774
    %v777 = vmul.u32 %v772, %v773
    %v778 = vmul.u32 %v772, %v774
    %v779 = vshll.u32 %v776, 16
    %v780 = vshrl.u32 %v776, 16
    %v781 = vshll.u32 %v777, 16
    %v782 = vshrl.u32 %v777, 16
    %vm783 = vc.u32 %v775, %v779
    %v784 = vsel %vm783, 1, 0
    %v785 = vadd.s32 %v775, %v779
    %v786 = vadd.s32 %v778, %v784
    %vm787 = vc.u32 %v785, %v781
    %v788 = vsel %vm787, 1, 0
    %v789 = vadd.s32 %v785, %v781
    %v790 = vadd.s32 %v786, %v788
    %v791 = vadd.s32 %v790, %v780
    %v792 = vadd.s32 %v791, %v782
    %v793 = vand.u32 %v770, 65535
    %v794 = vshrl.u32 %v770, 16
    %v795 = vand.u32 %v765, 65535
    %v796 = vshrl.u32 %v765, 16
    %v797 = vmul.u32 %v793, %v795
    %v798 = vmul.u32 %v793, %v796
    %v799 = vmul.u32 %v794, %v795
    %v800 = vmul.u32 %v794, %v796
    %v801 = vshll.u32 %v798, 16
    %v802 = vshrl.u32 %v798, 16
    %v803 = vshll.u32 %v799, 16
    %v804 = vshrl.u32 %v799, 16
    %vm805 = vc.u32 %v797, %v801
    %v806 = vsel %vm805, 1, 0
    %v807 = vadd.s32 %v797, %v801
    %v808 = vadd.s32 %v800, %v806
    %vm809 = vc.u32 %v807, %v803
    %v810 = vsel %vm809, 1, 0
    %v811 = vadd.s32 %v807, %v803
    %v812 = vadd.s32 %v808, %v810
    %v813 = vadd.s32 %v812, %v802
    %v814 = vadd.s32 %v813, %v804
    %v815 = vmul.u32 %v770, %v761
    %v816 = vadd.s32 %v792, %v811
    %vm817 = vc.u32 %v792, %v811
    %v818 = vadd.s32 %v814, 1
    %v819 = vsel %vm817, %v818, %v814
    %v820 = vadd.s32 %v815, %v819
    %v821 = vadd.s32 %v820, 536870912
    %v822 = vshrl.u32 %v821, 30
    %v823 = vshll.u32 %v822, 30
    %v824 = vsub.s32 %v820, %v823
    %vm825 = vcmp.lt.s32.totalorder %v824, 0
    %v826 = vsub.s32 0, %v824
    %v827 = vsel %vm825, %v826, %v824
    %v828 = vclz %v827
    %v829 = vsub.s32 %v828, 2
    %vm830 = vcmp.gt.s32.totalorder 0, %v829
    %v831 = vsel %vm830, 0, %v829
    %v832 = vsub.s32 32, %v831
    %v833 = vshll.u32 %v824, %v831
    %v834 = vshrl.u32 %v816, %v832
    %v835 = vor.u32 %v833, %v834
    %v836 = vsub.s32 4294967266, %v831
    %v837 = vadd.s32 %v836, 127
    %v838 = vshll.u32 %v837, 23
    %v839 = vor.u32 4788187, %v838
    %v840 = vand.u32 2147483647, %v839
    %v842 = vcvt.s32.f32 %v835
    %v843 = vmul.f32 %v842, %v840
    %v844 = vxor.u32 %v843, 2147483648
    %v845 = vsel %vm724, %v844, %v843
    %v846 = vsub.s32 4, %v822
    %v847 = vsel %vm724, %v846, %v822
    %v848 = vsel %vm723, %v102, %v845
    %v849 = vsel %vm723, 0, %v847
    %v850 = vmul.f32 %v848, %v848
    %v851 = vmul.f32 %v850, -0.001358992
    %v852 = vadd.f32 %v851, 0.041655596
    %v853 = vmul.f32 %v850, %v852
    %v854 = vadd.f32 %v853, -0.4999988
    %v855 = vmul.f32 %v850, %v854
    %v856 = vadd.f32 1.0, %v855
    %v857 = vmul.f32 %v848, %v848
    %v858 = vmul.f32 %v857, -0.00019511016
    %v859 = vadd.f32 %v858, 0.008332121
    %v860 = vmul.f32 %v857, %v859
    %v861 = vadd.f32 %v860, -0.16666654
    %v862 = vmul.f32 %v857, %v861
    %v863 = vadd.f32 %v862, 1.0
    %v864 = vmul.f32 %v863, %v848
    %vm865 = vweird.f32 %v102
    %v866 = vand.u32 %v849, 3
    %vm867 = vcmp.lt.s32.totalorder %v866, 2
    %vm868 = vcmp.eq.s32.totalorder %v866, 0
    %v869 = vxor.u32 %v864, 2147483648
    %v870 = vsel %vm868, %v856, %v869
    %vm871 = vcmp.eq.s32.totalorder %v866, 2
    %v872 = vxor.u32 %v856, 2147483648
    %v873 = vsel %vm871, %v872, %v864
    %v874 = vsel %vm867, %v870, %v873
    %v875 = vsel %vm865, nan, %v874
    %v876 = vand.u32 2147483647, %v103
    %vm877 = vcmp.le.f32.partialorder %v876, 0.7853982
    %vm878 = vcmp.lt.s32.totalorder %v103, 0
    %v879 = vand.u32 %v103, 2139095040
    %v880 = vshrl.u32 %v879, 23
    %v881 = vsub.s32 %v880, 127
    %v882 = vand.u32 2147483647, %v103
    %v883 = vand.u32 %v882, 8388607
    %v884 = vor.u32 %v883, 8388608
    %v885 = vsub.s32 0, %v884
    %v886 = vadd.s32 %v881, 1
    %vm887 = vcmp.gt.s32.totalorder %v886, 0
    %v888 = vsel %vm887, %v886, 0
    %v889 = vshrl.u32 %v888, 5
    %v890 = vand.u32 %v888, 31
    %v891 = vsub.s32 32, %v890
    %v892 = vshrl.u32 683565275, %v891
    %v893 = vshll.u32 683565275, %v890
    %v894 = vshrl.u32 2475754826, %v891
    %v895 = vor.u32 %v893, %v894
    %v896 = vshll.u32 2475754826, %v890
    %v897 = vshrl.u32 2131351028, %v891
    %v898 = vor.u32 %v896, %v897
    %v899 = vshll.u32 2131351028, %v890
    %v900 = vshrl.u32 2102212464, %v891
    %v901 = vor.u32 %v899, %v900
    %v902 = vshll.u32 2102212464, %v890
    %v903 = vshrl.u32 920167782, %v891
    %v904 = vor.u32 %v902, %v903
    %v905 = vshll.u32 920167782, %v890
    %v906 = vshrl.u32 1326507024, %v891
    %v907 = vor.u32 %v905, %v906
    %vm908 = vcmp.lt.s32.totalorder %v889, 1
    %vm909 = vcmp.lt.s32.totalorder %v889, 2
    %vm910 = vcmp.lt.s32.totalorder %v889, 3
    %vm911 = vcmp.lt.s32.totalorder %v889, 4
    %v912 = vsel %vm908, %v892, %v895
    %v913 = vsel %vm911, %v901, 2102212464
    %v914 = vsel %vm910, %v898, %v913
    %v915 = vsel %vm909, %v912, %v914
    %v916 = vsel %vm908, %v895, %v898
    %v917 = vsel %vm911, %v904, 920167782
    %v918 = vsel %vm910, %v901, %v917
    %v919 = vsel %vm909, %v916, %v918
    %v920 = vsel %vm908, %v898, %v901
    %v921 = vsel %vm911, %v907, 1326507024
    %v922 = vsel %vm910, %v904, %v921
    %v923 = vsel %vm909, %v920, %v922
    %v924 = vshll.u32 %v884, 8
    %v925 = vand.u32 %v924, 65535
    %v926 = vshrl.u32 %v924, 16
    %v927 = vand.u32 %v923, 65535
    %v928 = vshrl.u32 %v923, 16
    %v929 = vmul.u32 %v925, %v927
    %v930 = vmul.u32 %v925, %v928
    %v931 = vmul.u32 %v926, %v927
    %v932 = vmul.u32 %v926, %v928
    %v933 = vshll.u32 %v930, 16
    %v934 = vshrl.u32 %v930, 16
    %v935 = vshll.u32 %v931, 16
    %v936 = vshrl.u32 %v931, 16
    %vm937 = vc.u32 %v929, %v933
    %v938 = vsel %vm937, 1, 0
    %v939 = vadd.s32 %v929, %v933
    %v940 = vadd.s32 %v932, %v938
    %vm941 = vc.u32 %v939, %v935
    %v942 = vsel %vm941, 1, 0
    %v943 = vadd.s32 %v939, %v935
    %v944 = vadd.s32 %v940, %v942
    %v945 = vadd.s32 %v944, %v934
    %v946 = vadd.s32 %v945, %v936
    %v947 = vand.u32 %v924, 65535
    %v948 = vshrl.u32 %v924, 16
    %v949 = vand.u32 %v919, 65535
    %v950 = vshrl.u32 %v919, 16
    %v951 = vmul.u32 %v947, %v949
    %v952 = vmul.u32 %v947, %v950
    %v953 = vmul.u32 %v948, %v949
    %v954 = vmul.u32 %v948, %v950
    %v955 = vshll.u32 %v952, 16
    %v956 = vshrl.u32 %v952, 16
    %v957 = vshll.u32 %v953, 16
    %v958 = vshrl.u32 %v953, 16
    %vm959 = vc.u32 %v951, %v955
    %v960 = vsel %vm959, 1, 0
    %v961 = vadd.s32 %v951, %v955
    %v962 = vadd.s32 %v954, %v960
    %vm963 = vc.u32 %v961, %v957
    %v964 = vsel %vm963, 1, 0
    %v965 = vadd.s32 %v961, %v957
    %v966 = vadd.s32 %v962, %v964
    %v967 = vadd.s32 %v966, %v956
    %v968 = vadd.s32 %v967, %v958
    %v969 = vmul.u32 %v924, %v915
    %v970 = vadd.s32 %v946, %v965
    %vm971 = vc.u32 %v946, %v965
    %v972 = vadd.s32 %v968, 1
    %v973 = vsel %vm971, %v972, %v968
    %v974 = vadd.s32 %v969, %v973
    %v975 = vadd.s32 %v974, 536870912
    %v976 = vshrl.u32 %v975, 30
    %v977 = vshll.u32 %v976, 30
    %v978 = vsub.s32 %v974, %v977
    %vm979 = vcmp.lt.s32.totalorder %v978, 0
    %v980 = vsub.s32 0, %v978
    %v981 = vsel %vm979, %v980, %v978
    %v982 = vclz %v981
    %v983 = vsub.s32 %v982, 2
    %vm984 = vcmp.gt.s32.totalorder 0, %v983
    %v985 = vsel %vm984, 0, %v983
    %v986 = vsub.s32 32, %v985
    %v987 = vshll.u32 %v978, %v985
    %v988 = vshrl.u32 %v970, %v986
    %v989 = vor.u32 %v987, %v988
    %v990 = vsub.s32 4294967266, %v985
    %v991 = vadd.s32 %v990, 127
    %v992 = vshll.u32 %v991, 23
    %v993 = vor.u32 4788187, %v992
    %v994 = vand.u32 2147483647, %v993
    %v996 = vcvt.s32.f32 %v989
    %v997 = vmul.f32 %v996, %v994
    %v998 = vxor.u32 %v997, 2147483648
    %v999 = vsel %vm878, %v998, %v997
    %v1000 = vsub.s32 4, %v976
    %v1001 = vsel %vm878, %v1000, %v976
    %v1002 = vsel %vm877, %v103, %v999
    %v1003 = vsel %vm877, 0, %v1001
    %v1004 = vmul.f32 %v1002, %v1002
    %v1005 = vmul.f32 %v1004, -0.001358992
    %v1006 = vadd.f32 %v1005, 0.041655596
    %v1007 = vmul.f32 %v1004, %v1006
    %v1008 = vadd.f32 %v1007, -0.4999988
    %v1009 = vmul.f32 %v1004, %v1008
    %v1010 = vadd.f32 1.0, %v1009
    %v1011 = vmul.f32 %v1002, %v1002
    %v1012 = vmul.f32 %v1011, -0.00019511016
    %v1013 = vadd.f32 %v1012, 0.008332121
    %v1014 = vmul.f32 %v1011, %v1013
    %v1015 = vadd.f32 %v1014, -0.16666654
    %v1016 = vmul.f32 %v1011, %v1015
    %v1017 = vadd.f32 %v1016, 1.0
    %v1018 = vmul.f32 %v1017, %v1002
    %vm1019 = vweird.f32 %v103
    %v1020 = vand.u32 %v1003, 3
    %vm1021 = vcmp.lt.s32.totalorder %v1020, 2
    %vm1022 = vcmp.eq.s32.totalorder %v1020, 0
    %v1023 = vxor.u32 %v1018, 2147483648
    %v1024 = vsel %vm1022, %v1010, %v1023
    %vm1025 = vcmp.eq.s32.totalorder %v1020, 2
    %v1026 = vxor.u32 %v1010, 2147483648
    %v1027 = vsel %vm1025, %v1026, %v1018
    %v1028 = vsel %vm1021, %v1024, %v1027
    %v1029 = vsel %vm1019, nan, %v1028
    %v1030 = vand.u32 2147483647, %v104
    %vm1031 = vcmp.le.f32.partialorder %v1030, 0.7853982
    %vm1032 = vcmp.lt.s32.totalorder %v104, 0
    %v1033 = vand.u32 %v104, 2139095040
    %v1034 = vshrl.u32 %v1033, 23
    %v1035 = vsub.s32 %v1034, 127
    %v1036 = vand.u32 2147483647, %v104
    %v1037 = vand.u32 %v1036, 8388607
    %v1038 = vor.u32 %v1037, 8388608
    %v1039 = vsub.s32 0, %v1038
    %v1040 = vadd.s32 %v1035, 1
    %vm1041 = vcmp.gt.s32.totalorder %v1040, 0
    %v1042 = vsel %vm1041, %v1040, 0
    %v1043 = vshrl.u32 %v1042, 5
    %v1044 = vand.u32 %v1042, 31
    %v1045 = vsub.s32 32, %v1044
    %v1046 = vshrl.u32 683565275, %v1045
    %v1047 = vshll.u32 683565275, %v1044
    %v1048 = vshrl.u32 2475754826, %v1045
    %v1049 = vor.u32 %v1047, %v1048
    %v1050 = vshll.u32 2475754826, %v1044
    %v1051 = vshrl.u32 2131351028, %v1045
    %v1052 = vor.u32 %v1050, %v1051
    %v1053 = vshll.u32 2131351028, %v1044
    %v1054 = vshrl.u32 2102212464, %v1045
    %v1055 = vor.u32 %v1053, %v1054
    %v1056 = vshll.u32 2102212464, %v1044
    %v1057 = vshrl.u32 920167782, %v1045
    %v1058 = vor.u32 %v1056, %v1057
    %v1059 = vshll.u32 920167782, %v1044
    %v1060 = vshrl.u32 1326507024, %v1045
    %v1061 = vor.u32 %v1059, %v1060
    %vm1062 = vcmp.lt.s32.totalorder %v1043, 1
    %vm1063 = vcmp.lt.s32.totalorder %v1043, 2
    %vm1064 = vcmp.lt.s32.totalorder %v1043, 3
    %vm1065 = vcmp.lt.s32.totalorder %v1043, 4
    %v1066 = vsel %vm1062, %v1046, %v1049
    %v1067 = vsel %vm1065, %v1055, 2102212464
    %v1068 = vsel %vm1064, %v1052, %v1067
    %v1069 = vsel %vm1063, %v1066, %v1068
    %v1070 = vsel %vm1062, %v1049, %v1052
    %v1071 = vsel %vm1065, %v1058, 920167782
    %v1072 = vsel %vm1064, %v1055, %v1071
    %v1073 = vsel %vm1063, %v1070, %v1072
    %v1074 = vsel %vm1062, %v1052, %v1055
    %v1075 = vsel %vm1065, %v1061, 1326507024
    %v1076 = vsel %vm1064, %v1058, %v1075
    %v1077 = vsel %vm1063, %v1074, %v1076
    %v1078 = vshll.u32 %v1038, 8
    %v1079 = vand.u32 %v1078, 65535
    %v1080 = vshrl.u32 %v1078, 16
    %v1081 = vand.u32 %v1077, 65535
    %v1082 = vshrl.u32 %v1077, 16
    %v1083 = vmul.u32 %v1079, %v1081
    %v1084 = vmul.u32 %v1079, %v1082
    %v1085 = vmul.u32 %v1080, %v1081
    %v1086 = vmul.u32 %v1080, %v1082
    %v1087 = vshll.u32 %v1084, 16
    %v1088 = vshrl.u32 %v1084, 16
    %v1089 = vshll.u32 %v1085, 16
    %v1090 = vshrl.u32 %v1085, 16
    %vm1091 = vc.u32 %v1083, %v1087
    %v1092 = vsel %vm1091, 1, 0
    %v1093 = vadd.s32 %v1083, %v1087
    %v1094 = vadd.s32 %v1086, %v1092
    %vm1095 = vc.u32 %v1093, %v1089
    %v1096 = vsel %vm1095, 1, 0
    %v1097 = vadd.s32 %v1093, %v1089
    %v1098 = vadd.s32 %v1094, %v1096
    %v1099 = vadd.s32 %v1098, %v1088
    %v1100 = vadd.s32 %v1099, %v1090
    %v1101 = vand.u32 %v1078, 65535
    %v1102 = vshrl.u32 %v1078, 16
    %v1103 = vand.u32 %v1073, 65535
    %v1104 = vshrl.u32 %v1073, 16
    %v1105 = vmul.u32 %v1101, %v1103
    %v1106 = vmul.u32 %v1101, %v1104
    %v1107 = vmul.u32 %v1102, %v1103
    %v1108 = vmul.u32 %v1102, %v1104
    %v1109 = vshll.u32 %v1106, 16
    %v1110 = vshrl.u32 %v1106, 16
    %v1111 = vshll.u32 %v1107, 16
    %v1112 = vshrl.u32 %v1107, 16
    %vm1113 = vc.u32 %v1105, %v1109
    %v1114 = vsel %vm1113, 1, 0
    %v1115 = vadd.s32 %v1105, %v1109
    %v1116 = vadd.s32 %v1108, %v1114
    %vm1117 = vc.u32 %v1115, %v1111
    %v1118 = vsel %vm1117, 1, 0
    %v1119 = vadd.s32 %v1115, %v1111
    %v1120 = vadd.s32 %v1116, %v1118
    %v1121 = vadd.s32 %v1120, %v1110
    %v1122 = vadd.s32 %v1121, %v1112
    %v1123 = vmul.u32 %v1078, %v1069
    %v1124 = vadd.s32 %v1100, %v1119
    %vm1125 = vc.u32 %v1100, %v1119
    %v1126 = vadd.s32 %v1122, 1
    %v1127 = vsel %vm1125, %v1126, %v1122
    %v1128 = vadd.s32 %v1123, %v1127
    %v1129 = vadd.s32 %v1128, 536870912
    %v1130 = vshrl.u32 %v1129, 30
    %v1131 = vshll.u32 %v1130, 30
    %v1132 = vsub.s32 %v1128, %v1131
    %vm1133 = vcmp.lt.s32.totalorder %v1132, 0
    %v1134 = vsub.s32 0, %v1132
    %v1135 = vsel %vm1133, %v1134, %v1132
    %v1136 = vclz %v1135
    %v1137 = vsub.s32 %v1136, 2
    %vm1138 = vcmp.gt.s32.totalorder 0, %v1137
    %v1139 = vsel %vm1138, 0, %v1137
    %v1140 = vsub.s32 32, %v1139
    %v1141 = vshll.u32 %v1132, %v1139
    %v1142 = vshrl.u32 %v1124, %v1140
    %v1143 = vor.u32 %v1141, %v1142
    %v1144 = vsub.s32 4294967266, %v1139
    %v1145 = vadd.s32 %v1144, 127
    %v1146 = vshll.u32 %v1145, 23
    %v1147 = vor.u32 4788187, %v1146
    %v1148 = vand.u32 2147483647, %v1147
    %v1150 = vcvt.s32.f32 %v1143
    %v1151 = vmul.f32 %v1150, %v1148
    %v1152 = vxor.u32 %v1151, 2147483648
    %v1153 = vsel %vm1032, %v1152, %v1151
    %v1154 = vsub.s32 4, %v1130
    %v1155 = vsel %vm1032, %v1154, %v1130
    %v1156 = vsel %vm1031, %v104, %v1153
    %v1157 = vsel %vm1031, 0, %v1155
    %v1158 = vmul.f32 %v1156, %v1156
    %v1159 = vmul.f32 %v1158, -0.001358992
    %v1160 = vadd.f32 %v1159, 0.041655596
    %v1161 = vmul.f32 %v1158, %v1160
    %v1162 = vadd.f32 %v1161, -0.4999988
    %v1163 = vmul.f32 %v1158, %v1162
    %v1164 = vadd.f32 1.0, %v1163
    %v1165 = vmul.f32 %v1156, %v1156
    %v1166 = vmul.f32 %v1165, -0.00019511016
    %v1167 = vadd.f32 %v1166, 0.008332121
    %v1168 = vmul.f32 %v1165, %v1167
    %v1169 = vadd.f32 %v1168, -0.16666654
    %v1170 = vmul.f32 %v1165, %v1169
    %v1171 = vadd.f32 %v1170, 1.0
    %v1172 = vmul.f32 %v1171, %v1156
    %vm1173 = vweird.f32 %v104
    %v1174 = vand.u32 %v1157, 3
    %vm1175 = vcmp.lt.s32.totalorder %v1174, 2
    %vm1176 = vcmp.eq.s32.totalorder %v1174, 0
    %v1177 = vxor.u32 %v1172, 2147483648
    %v1178 = vsel %vm1176, %v1164, %v1177
    %vm1179 = vcmp.eq.s32.totalorder %v1174, 2
    %v1180 = vxor.u32 %v1164, 2147483648
    %v1181 = vsel %vm1179, %v1180, %v1172
    %v1182 = vsel %vm1175, %v1178, %v1181
    %v1183 = vsel %vm1173, nan, %v1182
    %v1184 = vand.u32 2147483647, %v105
    %vm1185 = vcmp.le.f32.partialorder %v1184, 0.7853982
    %vm1186 = vcmp.lt.s32.totalorder %v105, 0
    %v1187 = vand.u32 %v105, 2139095040
    %v1188 = vshrl.u32 %v1187, 23
    %v1189 = vsub.s32 %v1188, 127
    %v1190 = vand.u32 2147483647, %v105
    %v1191 = vand.u32 %v1190, 8388607
    %v1192 = vor.u32 %v1191, 8388608
    %v1193 = vsub.s32 0, %v1192
    %v1194 = vadd.s32 %v1189, 1
    %vm1195 = vcmp.gt.s32.totalorder %v1194, 0
    %v1196 = vsel %vm1195, %v1194, 0
    %v1197 = vshrl.u32 %v1196, 5
    %v1198 = vand.u32 %v1196, 31
    %v1199 = vsub.s32 32, %v1198
    %v1200 = vshrl.u32 683565275, %v1199
    %v1201 = vshll.u32 683565275, %v1198
    %v1202 = vshrl.u32 2475754826, %v1199
    %v1203 = vor.u32 %v1201, %v1202
    %v1204 = vshll.u32 2475754826, %v1198
    %v1205 = vshrl.u32 2131351028, %v1199
    %v1206 = vor.u32 %v1204, %v1205
    %v1207 = vshll.u32 2131351028, %v1198
    %v1208 = vshrl.u32 2102212464, %v1199
    %v1209 = vor.u32 %v1207, %v1208
    %v1210 = vshll.u32 2102212464, %v1198
    %v1211 = vshrl.u32 920167782, %v1199
    %v1212 = vor.u32 %v1210, %v1211
    %v1213 = vshll.u32 920167782, %v1198
    %v1214 = vshrl.u32 1326507024, %v1199
    %v1215 = vor.u32 %v1213, %v1214
    %vm1216 = vcmp.lt.s32.totalorder %v1197, 1
    %vm1217 = vcmp.lt.s32.totalorder %v1197, 2
    %vm1218 = vcmp.lt.s32.totalorder %v1197, 3
    %vm1219 = vcmp.lt.s32.totalorder %v1197, 4
    %v1220 = vsel %vm1216, %v1200, %v1203
    %v1221 = vsel %vm1219, %v1209, 2102212464
    %v1222 = vsel %vm1218, %v1206, %v1221
    %v1223 = vsel %vm1217, %v1220, %v1222
    %v1224 = vsel %vm1216, %v1203, %v1206
    %v1225 = vsel %vm1219, %v1212, 920167782
    %v1226 = vsel %vm1218, %v1209, %v1225
    %v1227 = vsel %vm1217, %v1224, %v1226
    %v1228 = vsel %vm1216, %v1206, %v1209
    %v1229 = vsel %vm1219, %v1215, 1326507024
    %v1230 = vsel %vm1218, %v1212, %v1229
    %v1231 = vsel %vm1217, %v1228, %v1230
    %v1232 = vshll.u32 %v1192, 8
    %v1233 = vand.u32 %v1232, 65535
    %v1234 = vshrl.u32 %v1232, 16
    %v1235 = vand.u32 %v1231, 65535
    %v1236 = vshrl.u32 %v1231, 16
    %v1237 = vmul.u32 %v1233, %v1235
    %v1238 = vmul.u32 %v1233, %v1236
    %v1239 = vmul.u32 %v1234, %v1235
    %v1240 = vmul.u32 %v1234, %v1236
    %v1241 = vshll.u32 %v1238, 16
    %v1242 = vshrl.u32 %v1238, 16
    %v1243 = vshll.u32 %v1239, 16
    %v1244 = vshrl.u32 %v1239, 16
    %vm1245 = vc.u32 %v1237, %v1241
    %v1246 = vsel %vm1245, 1, 0
    %v1247 = vadd.s32 %v1237, %v1241
    %v1248 = vadd.s32 %v1240, %v1246
    %vm1249 = vc.u32 %v1247, %v1243
    %v1250 = vsel %vm1249, 1, 0
    %v1251 = vadd.s32 %v1247, %v1243
    %v1252 = vadd.s32 %v1248, %v1250
    %v1253 = vadd.s32 %v1252, %v1242
    %v1254 = vadd.s32 %v1253, %v1244
    %v1255 = vand.u32 %v1232, 65535
    %v1256 = vshrl.u32 %v1232, 16
    %v1257 = vand.u32 %v1227, 65535
    %v1258 = vshrl.u32 %v1227, 16
    %v1259 = vmul.u32 %v1255, %v1257
    %v1260 = vmul.u32 %v1255, %v1258
    %v1261 = vmul.u32 %v1256, %v1257
    %v1262 = vmul.u32 %v1256, %v1258
    %v1263 = vshll.u32 %v1260, 16
    %v1264 = vshrl.u32 %v1260, 16
    %v1265 = vshll.u32 %v1261, 16
    %v1266 = vshrl.u32 %v1261, 16
    %vm1267 = vc.u32 %v1259, %v1263
    %v1268 = vsel %vm1267, 1, 0
    %v1269 = vadd.s32 %v1259, %v1263
    %v1270 = vadd.s32 %v1262, %v1268
    %vm1271 = vc.u32 %v1269, %v1265
    %v1272 = vsel %vm1271, 1, 0
    %v1273 = vadd.s32 %v1269, %v1265
    %v1274 = vadd.s32 %v1270, %v1272
    %v1275 = vadd.s32 %v1274, %v1264
    %v1276 = vadd.s32 %v1275, %v1266
    %v1277 = vmul.u32 %v1232, %v1223
    %v1278 = vadd.s32 %v1254, %v1273
    %vm1279 = vc.u32 %v1254, %v1273
    %v1280 = vadd.s32 %v1276, 1
    %v1281 = vsel %vm1279, %v1280, %v1276
    %v1282 = vadd.s32 %v1277, %v1281
    %v1283 = vadd.s32 %v1282, 536870912
    %v1284 = vshrl.u32 %v1283, 30
    %v1285 = vshll.u32 %v1284, 30
    %v1286 = vsub.s32 %v1282, %v1285
    %vm1287 = vcmp.lt.s32.totalorder %v1286, 0
    %v1288 = vsub.s32 0, %v1286
    %v1289 = vsel %vm1287, %v1288, %v1286
    %v1290 = vclz %v1289
    %v1291 = vsub.s32 %v1290, 2
    %vm1292 = vcmp.gt.s32.totalorder 0, %v1291
    %v1293 = vsel %vm1292, 0, %v1291
    %v1294 = vsub.s32 32, %v1293
    %v1295 = vshll.u32 %v1286, %v1293
    %v1296 = vshrl.u32 %v1278, %v1294
    %v1297 = vor.u32 %v1295, %v1296
    %v1298 = vsub.s32 4294967266, %v1293
    %v1299 = vadd.s32 %v1298, 127
    %v1300 = vshll.u32 %v1299, 23
    %v1301 = vor.u32 4788187, %v1300
    %v1302 = vand.u32 2147483647, %v1301
    %v1304 = vcvt.s32.f32 %v1297
    %v1305 = vmul.f32 %v1304, %v1302
    %v1306 = vxor.u32 %v1305, 2147483648
    %v1307 = vsel %vm1186, %v1306, %v1305
    %v1308 = vsub.s32 4, %v1284
    %v1309 = vsel %vm1186, %v1308, %v1284
    %v1310 = vsel %vm1185, %v105, %v1307
    %v1311 = vsel %vm1185, 0, %v1309
    %v1312 = vmul.f32 %v1310, %v1310
    %v1313 = vmul.f32 %v1312, -0.001358992
    %v1314 = vadd.f32 %v1313, 0.041655596
    %v1315 = vmul.f32 %v1312, %v1314
    %v1316 = vadd.f32 %v1315, -0.4999988
    %v1317 = vmul.f32 %v1312, %v1316
    %v1318 = vadd.f32 1.0, %v1317
    %v1319 = vmul.f32 %v1310, %v1310
    %v1320 = vmul.f32 %v1319, -0.00019511016
    %v1321 = vadd.f32 %v1320, 0.008332121
    %v1322 = vmul.f32 %v1319, %v1321
    %v1323 = vadd.f32 %v1322, -0.16666654
    %v1324 = vmul.f32 %v1319, %v1323
    %v1325 = vadd.f32 %v1324, 1.0
    %v1326 = vmul.f32 %v1325, %v1310
    %vm1327 = vweird.f32 %v105
    %v1328 = vand.u32 %v1311, 3
    %vm1329 = vcmp.lt.s32.totalorder %v1328, 2
    %vm1330 = vcmp.eq.s32.totalorder %v1328, 0
    %v1331 = vxor.u32 %v1326, 2147483648
    %v1332 = vsel %vm1330, %v1318, %v1331
    %vm1333 = vcmp.eq.s32.totalorder %v1328, 2
    %v1334 = vxor.u32 %v1318, 2147483648
    %v1335 = vsel %vm1333, %v1334, %v1326
    %v1336 = vsel %vm1329, %v1332, %v1335
    %v1337 = vsel %vm1327, nan, %v1336
    %1338 = vset.pattern.permute.xlu0 1
    %1339 = vperm.xlu0 %1338, %v61
    %v1340 = vpop.permute.xlu0 %1339
    %1342 = vset.pattern.permute.xlu0 1
    %1343 = vperm.xlu0 %1342, %v62
    %v1344 = vpop.permute.xlu0 %1343
    %v1346 = vmul.f32 %v1340, %v259
    %v1347 = vmul.f32 %v1340, %v413
    %v1348 = vmul.f32 %v1340, %v567
    %v1349 = vmul.f32 %v1340, %v721
    %v1350 = vmul.f32 %v1344, %v875
    %v1351 = vmul.f32 %v1344, %v1029
    %v1352 = vmul.f32 %v1344, %v1183
    %v1353 = vmul.f32 %v1344, %v1337
    %vm1354 = vcmask 1043456
    %v1355 = vsel %vm1354, %v1350, 0.0
    %v1356 = vadd.f32 %v1346, %v1355
    %v1357 = vrot.slane %v1356, 4
    %v1358 = vadd.f32 %v1356, %v1357
    %v1359 = vrot.slane %v1358, 2
    %v1360 = vadd.f32 %v1358, %v1359
    %v1361 = vrot.slane %v1360, 1
    %v1362 = vadd.f32 %v1360, %v1361
    %v1363 = vsel %vm1354, %v1351, 0.0
    %v1364 = vadd.f32 %v1347, %v1363
    %v1365 = vrot.slane %v1364, 4
    %v1366 = vadd.f32 %v1364, %v1365
    %v1367 = vrot.slane %v1366, 2
    %v1368 = vadd.f32 %v1366, %v1367
    %v1369 = vrot.slane %v1368, 1
    %v1370 = vadd.f32 %v1368, %v1369
    %v1371 = vsel %vm1354, %v1352, 0.0
    %v1372 = vadd.f32 %v1348, %v1371
    %v1373 = vrot.slane %v1372, 4
    %v1374 = vadd.f32 %v1372, %v1373
    %v1375 = vrot.slane %v1374, 2
    %v1376 = vadd.f32 %v1374, %v1375
    %v1377 = vrot.slane %v1376, 1
    %v1378 = vadd.f32 %v1376, %v1377
    %v1379 = vsel %vm1354, %v1353, 0.0
    %v1380 = vadd.f32 %v1349, %v1379
    %v1381 = vrot.slane %v1380, 4
    %v1382 = vadd.f32 %v1380, %v1381
    %v1383 = vrot.slane %v1382, 2
    %v1384 = vadd.f32 %v1382, %v1383
    %v1385 = vrot.slane %v1384, 1
    %v1386 = vadd.f32 %v1384, %v1385
    %1387 = vset.pattern.permute.xlu0 3
    %1388 = vperm.xlu0 %1387, %v61
    %v1389 = vpop.permute.xlu0 %1388
    %v1391 = vmul.f32 %v1389, %v74
    %v1392 = vmul.f32 %v1389, %v75
    %v1393 = vmul.f32 %v1389, %v76
    %v1394 = vmul.f32 %v1389, %v77
    %1395 = vset.pattern.permute.xlu0 4
    %1396 = vperm.xlu0 %1395, %v61
    %v1397 = vpop.permute.xlu0 %1396
    %v1399 = vadd.f32 %v1391, %v1397
    %v1400 = vadd.f32 %v1392, %v1397
    %v1401 = vadd.f32 %v1393, %v1397
    %v1402 = vadd.f32 %v1394, %v1397
    %1403 = vset.pattern.permute.xlu0 6
    %1404 = vperm.xlu0 %1403, %v61
    %v1405 = vpop.permute.xlu0 %1404
    %v1409 = vperm.slane %v59, 0
    %v1410 = vperm.slane %v59, 4
    %v1411 = vperm.slane %v60, 0
    %v1412 = vperm.slane %v60, 4
    %v1417 = vperm.slane %v1409, 0
    %v1418 = vperm.slane %v1410, 0
    %v1419 = vperm.slane %v1411, 0
    %v1420 = vperm.slane %v1412, 0
    %v1421 = vmul.f32 %v1405, %v1417
    %v1422 = vmul.f32 %v1405, %v1418
    %v1423 = vmul.f32 %v1405, %v1419
    %v1424 = vmul.f32 %v1405, %v1420
    %v1425 = vadd.f32 %v1399, %v1421
    %v1426 = vadd.f32 %v1400, %v1422
    %v1427 = vadd.f32 %v1401, %v1423
    %v1428 = vadd.f32 %v1402, %v1424
    %1429 = vset.pattern.permute.xlu0 7
    %1430 = vperm.xlu0 %1429, %v61
    %v1431 = vpop.permute.xlu0 %1430
    %v1433 = vperm.slane %v59, 1
    %v1434 = vperm.slane %v59, 5
    %v1435 = vperm.slane %v60, 1
    %v1436 = vperm.slane %v60, 5
    %v1441 = vperm.slane %v1433, 1
    %v1442 = vperm.slane %v1434, 1
    %v1443 = vperm.slane %v1435, 1
    %v1444 = vperm.slane %v1436, 1
    %v1445 = vmul.f32 %v1431, %v1441
    %v1446 = vmul.f32 %v1431, %v1442
    %v1447 = vmul.f32 %v1431, %v1443
    %v1448 = vmul.f32 %v1431, %v1444
    %v1449 = vadd.f32 %v1425, %v1445
    %v1450 = vadd.f32 %v1426, %v1446
    %v1451 = vadd.f32 %v1427, %v1447
    %v1452 = vadd.f32 %v1428, %v1448
    %1453 = vset.pattern.permute.xlu0 8
    %1454 = vperm.xlu0 %1453, %v61
    %v1455 = vpop.permute.xlu0 %1454
    %v1457 = vperm.slane %v59, 2
    %v1458 = vperm.slane %v59, 6
    %v1459 = vperm.slane %v60, 2
    %v1460 = vperm.slane %v60, 6
    %v1465 = vperm.slane %v1457, 2
    %v1466 = vperm.slane %v1458, 2
    %v1467 = vperm.slane %v1459, 2
    %v1468 = vperm.slane %v1460, 2
    %v1469 = vmul.f32 %v1455, %v1465
    %v1470 = vmul.f32 %v1455, %v1466
    %v1471 = vmul.f32 %v1455, %v1467
    %v1472 = vmul.f32 %v1455, %v1468
    %v1473 = vadd.f32 %v1449, %v1469
    %v1474 = vadd.f32 %v1450, %v1470
    %v1475 = vadd.f32 %v1451, %v1471
    %v1476 = vadd.f32 %v1452, %v1472
    %1477 = vset.pattern.permute.xlu0 9
    %1478 = vperm.xlu0 %1477, %v61
    %v1479 = vpop.permute.xlu0 %1478
    %v1481 = vperm.slane %v59, 3
    %v1482 = vperm.slane %v59, 7
    %v1483 = vperm.slane %v60, 3
    %v1484 = vperm.slane %v60, 7
    %v1489 = vperm.slane %v1481, 3
    %v1490 = vperm.slane %v1482, 3
    %v1491 = vperm.slane %v1483, 3
    %v1492 = vperm.slane %v1484, 3
    %v1493 = vmul.f32 %v1479, %v1489
    %v1494 = vmul.f32 %v1479, %v1490
    %v1495 = vmul.f32 %v1479, %v1491
    %v1496 = vmul.f32 %v1479, %v1492
    %v1497 = vadd.f32 %v1473, %v1493
    %v1498 = vadd.f32 %v1474, %v1494
    %v1499 = vadd.f32 %v1475, %v1495
    %v1500 = vadd.f32 %v1476, %v1496
    %v1501 = vadd.f32 %v1497, %v1362
    %v1502 = vadd.f32 %v1498, %v1370
    %v1503 = vadd.f32 %v1499, %v1378
    %v1504 = vadd.f32 %v1500, %v1386
    %vm1505 = vcmp.gt.f32.partialorder %v1497, 20.0
    %vm1506 = vcmp.gt.f32.partialorder %v1498, 20.0
    %vm1507 = vcmp.gt.f32.partialorder %v1499, 20.0
    %vm1508 = vcmp.gt.f32.partialorder %v1500, 20.0
    %v1509 = vmin.f32 %v1497, 20.0
    %v1510 = vmin.f32 %v1498, 20.0
    %v1511 = vmin.f32 %v1499, 20.0
    %v1512 = vmin.f32 %v1500, 20.0
    %v1513 = vmul.f32 %v1509, 1.442695
    %v1514 = vpow.pop %v1513
    %v1515 = vmul.f32 %v1510, 1.442695
    %v1516 = vpow.pop %v1515
    %v1517 = vmul.f32 %v1511, 1.442695
    %v1518 = vpow.pop %v1517
    %v1519 = vmul.f32 %v1512, 1.442695
    %v1520 = vpow.pop %v1519
    %v1521 = vadd.f32 %v1514, 1.0
    %v1522 = vlog2.pop %v1521
    %v1523 = vmul.f32 %v1522, 0.6931472
    %v1524 = vmul.f32 -0.5, %v1514
    %v1525 = vadd.f32 %v1524, 1.0
    %v1526 = vmul.f32 %v1525, %v1514
    %v1527 = vand.u32 2147483647, %v1514
    %vm1528 = vcmp.lt.f32.partialorder %v1527, 0.0004427343
    %v1529 = vsel %vm1528, %v1526, %v1523
    %v1530 = vadd.f32 %v1516, 1.0
    %v1531 = vlog2.pop %v1530
    %v1532 = vmul.f32 %v1531, 0.6931472
    %v1533 = vmul.f32 -0.5, %v1516
    %v1534 = vadd.f32 %v1533, 1.0
    %v1535 = vmul.f32 %v1534, %v1516
    %v1536 = vand.u32 2147483647, %v1516
    %vm1537 = vcmp.lt.f32.partialorder %v1536, 0.0004427343
    %v1538 = vsel %vm1537, %v1535, %v1532
    %v1539 = vadd.f32 %v1518, 1.0
    %v1540 = vlog2.pop %v1539
    %v1541 = vmul.f32 %v1540, 0.6931472
    %v1542 = vmul.f32 -0.5, %v1518
    %v1543 = vadd.f32 %v1542, 1.0
    %v1544 = vmul.f32 %v1543, %v1518
    %v1545 = vand.u32 2147483647, %v1518
    %vm1546 = vcmp.lt.f32.partialorder %v1545, 0.0004427343
    %v1547 = vsel %vm1546, %v1544, %v1541
    %v1548 = vadd.f32 %v1520, 1.0
    %v1549 = vlog2.pop %v1548
    %v1550 = vmul.f32 %v1549, 0.6931472
    %v1551 = vmul.f32 -0.5, %v1520
    %v1552 = vadd.f32 %v1551, 1.0
    %v1553 = vmul.f32 %v1552, %v1520
    %v1554 = vand.u32 2147483647, %v1520
    %vm1555 = vcmp.lt.f32.partialorder %v1554, 0.0004427343
    %v1556 = vsel %vm1555, %v1553, %v1550
    %v1557 = vsel %vm1505, %v1497, %v1529
    %v1558 = vsel %vm1506, %v1498, %v1538
    %v1559 = vsel %vm1507, %v1499, %v1547
    %v1560 = vsel %vm1508, %v1500, %v1556
    %1561 = vset.pattern.permute.xlu0 5
    %1562 = vperm.xlu0 %1561, %v61
    %v1563 = vpop.permute.xlu0 %1562
    %v1565 = vmul.f32 %v1563, %v1557
    %v1566 = vmul.f32 %v1563, %v1558
    %v1567 = vmul.f32 %v1563, %v1559
    %v1568 = vmul.f32 %v1563, %v1560
    %v1569 = vperm.slane %v1501, 1
    %v1570 = vperm.slane %v1502, 1
    %v1571 = vperm.slane %v1503, 1
    %v1572 = vperm.slane %v1504, 1
    %v1573 = vadd.f32 %v1569, %v1565
    %v1574 = vadd.f32 %v1570, %v1566
    %v1575 = vadd.f32 %v1571, %v1567
    %v1576 = vadd.f32 %v1572, %v1568
    %vm1577 = vcmp.lt.f32.partialorder %v1573, -1.0
    %vm1578 = vcmp.lt.f32.partialorder %v1574, -1.0
    %vm1579 = vcmp.lt.f32.partialorder %v1575, -1.0
    %vm1580 = vcmp.lt.f32.partialorder %v1576, -1.0
    %v1581 = vsub.f32 %v1573, -1.0
    %v1582 = vsub.f32 %v1574, -1.0
    %v1583 = vsub.f32 %v1575, -1.0
    %v1584 = vsub.f32 %v1576, -1.0
    %v1585 = vmul.f32 %v1581, 0.01
    %v1586 = vmul.f32 %v1582, 0.01
    %v1587 = vmul.f32 %v1583, 0.01
    %v1588 = vmul.f32 %v1584, 0.01
    %v1589 = vadd.f32 %v1585, -1.0
    %v1590 = vadd.f32 %v1586, -1.0
    %v1591 = vadd.f32 %v1587, -1.0
    %v1592 = vadd.f32 %v1588, -1.0
    %v1593 = vsel %vm1577, %v1589, %v1573
    %v1594 = vsel %vm1578, %v1590, %v1574
    %v1595 = vsel %vm1579, %v1591, %v1575
    %v1596 = vsel %vm1580, %v1592, %v1576
    %vm1597 = vcmp.gt.f32.partialorder %v1593, 1.0
    %vm1598 = vcmp.gt.f32.partialorder %v1594, 1.0
    %vm1599 = vcmp.gt.f32.partialorder %v1595, 1.0
    %vm1600 = vcmp.gt.f32.partialorder %v1596, 1.0
    %v1601 = vsub.f32 %v1593, 1.0
    %v1602 = vsub.f32 %v1594, 1.0
    %v1603 = vsub.f32 %v1595, 1.0
    %v1604 = vsub.f32 %v1596, 1.0
    %v1605 = vmul.f32 %v1601, 0.01
    %v1606 = vmul.f32 %v1602, 0.01
    %v1607 = vmul.f32 %v1603, 0.01
    %v1608 = vmul.f32 %v1604, 0.01
    %v1609 = vadd.f32 %v1605, 1.0
    %v1610 = vadd.f32 %v1606, 1.0
    %v1611 = vadd.f32 %v1607, 1.0
    %v1612 = vadd.f32 %v1608, 1.0
    %v1613 = vsel %vm1597, %v1609, %v1593
    %v1614 = vsel %vm1598, %v1610, %v1594
    %v1615 = vsel %vm1599, %v1611, %v1595
    %v1616 = vsel %vm1600, %v1612, %v1596
    %v1621 = vrot.slane %v1614, 4
    %v1622 = vrot.slane %v1616, 4
    %v1623 = vsel %vm1354, %v1613, %v1621
    %v1624 = vsel %vm1354, %v1615, %v1622
    %1627 = vst [vmem:[#allocation8] sm:$0x77] %v1623
    %1628 = vst [vmem:[#allocation8 + $0x8] sm:$0x77] %v1624
    // Predicated region
    $region26: #{tpu_custom_call.1} parent=1 // pred_check
      _
    $region27: #{tpu_custom_call.1} parent=1 // pred_check_branch
      %1630 = sbr.rel (0) target = $region29
    $region28: #{tpu_custom_call.1} parent=1 // pred_region
      %1632 = vsyncadd [#allocation4], 0
      %s1634 = sshll.u32 [#allocation8], 4
      %s1635 = int_to_ptr.vmem [resolvable:$true] %s1634
      %s1636 = sshll.u32 %s3, 4
      %s1637 = int_to_ptr.hbm [resolvable:$true] %s1636
      %1639 = dma.vmem_to_hbm [thread:$0]  %s1635, 256, %s1637, [#allocation4]
    $region29: #{tpu_custom_call.1} parent=1 // pred_fallthru
      _
    // Predicated region
    $region30: #{tpu_custom_call.1} parent=1 // pred_check
      _
    $region31: #{tpu_custom_call.1} parent=1 // pred_check_branch
      %1641 = sbr.rel (0) target = $region33
    $region32: #{tpu_custom_call.1} parent=1 // pred_region
      %1643 = dma.done [#allocation4], 256
    $region33: #{tpu_custom_call.1} parent=1 // pred_fallthru
      _
    %1644 = vsyncpa [#allocation3], 1
    %1645 = vsyncpa [#allocation6], 1
    %1646 = vsyncpa [#allocation4], 1

</llo_original>
